<compile_context>
chip_gen: v7x
topology: tpu7x:2x2x1
jax: 0.10.0
libtpu: 0.0.40
codegen_flags: <defaults>
</compile_context>

<pallas_src>
import math
from functools import partial

import jax
import jax.numpy as jnp
from jax import lax
from jax.experimental import pallas as pl
from jax.experimental.pallas import tpu as pltpu


def timesformer_attention_kernel(x_ref, wqkv_ref, bqkv_ref, wo_ref, bo_ref,
                                 out_ref, *, num_heads):
    TB, S, C = x_ref.shape
    hd = C // num_heads

    # --- fused qkv projection over the whole (TB*S, C) slab -----------------
    # bf16 MXU operands, f32 accumulation.  The 1/sqrt(hd) scale is already
    # folded into the q columns of wqkv / bqkv on the host.
    x = x_ref[...].reshape(TB * S, C).astype(jnp.bfloat16)
    qkv = jnp.dot(x, wqkv_ref[...], preferred_element_type=jnp.float32)
    qkv = qkv + bqkv_ref[...]                      # (TB*S, 3C) f32

    bo = bo_ref[...]                               # (1, C) f32

    # --- per-(batch-element, head) attention; static unroll (TB, NH small) --
    for b in range(TB):
        qkv_b = qkv[b * S:(b + 1) * S]             # (S, 3C) f32, static slice
        acc = jnp.zeros((S, C), dtype=jnp.float32)
        for h in range(num_heads):
            qh = qkv_b[:, h * hd:(h + 1) * hd].astype(jnp.bfloat16)
            kh = qkv_b[:, C + h * hd:C + (h + 1) * hd].astype(jnp.bfloat16)
            vh = qkv_b[:, 2 * C + h * hd:2 * C + (h + 1) * hd].astype(jnp.bfloat16)

            # scores: contract the head dim of BOTH operands -> no K transpose
            s = lax.dot_general(qh, kh, (((1,), (1,)), ((), ())),
                                preferred_element_type=jnp.float32)    # (S, S)
            s = s - jnp.max(s, axis=-1, keepdims=True)
            p = jnp.exp(s)
            p = p * pl.reciprocal(jnp.sum(p, axis=-1, keepdims=True), approx=True)
            # attn_drop / output dropout have prob 0.0 (config default) -> identity.

            ctx_h = jnp.dot(p.astype(jnp.bfloat16), vh,
                            preferred_element_type=jnp.float32)        # (S, hd)
            # fold the per-head output projection into a single accumulator
            # (replaces the ctx concat + one big (S,C)@(C,C) matmul).
            acc = acc + jnp.dot(ctx_h.astype(jnp.bfloat16),
                                wo_ref[h * hd:(h + 1) * hd, :],
                                preferred_element_type=jnp.float32)    # (S, C)

        out_ref[b] = (acc + bo).astype(out_ref.dtype)


def timesformer_attention(hidden_states, params, *, num_heads,
                          block_b=None, out_dtype=None):
    B, S, C = hidden_states.shape
    assert C % num_heads == 0, "hidden_size must be divisible by num_heads"
    hd = C // num_heads
    scale = hd ** -0.5
    out_dtype = hidden_states.dtype if out_dtype is None else out_dtype

    # Batch block: largest divisor of B <= 8 (amortizes per-grid-step overhead
    # and keeps the MXU M dimension = TB*S well fed, which is essential for
    # temporal attention where S ~= num_frames ~= 8).
    if block_b is None:
        block_b = max(d for d in range(1, min(B, 8) + 1) if B % d == 0)
    assert B % block_b == 0, "block_b must divide the batch dimension"

    # Host-side weight prep (free, one-time): fold 1/sqrt(hd) into the q
    # columns; bf16 MXU operands; biases stay f32.
    wqkv = jnp.asarray(params["wqkv"], jnp.float32)
    bqkv = jnp.asarray(params["bqkv"], jnp.float32).reshape(1, 3 * C)
    wqkv = wqkv.at[:, :C].multiply(scale).astype(jnp.bfloat16)
    bqkv = bqkv.at[:, :C].multiply(scale)
    wo = jnp.asarray(params["wo"], jnp.float32).astype(jnp.bfloat16)
    bo = jnp.asarray(params["bo"], jnp.float32).reshape(1, C)

    kernel = partial(timesformer_attention_kernel, num_heads=num_heads)

    def const_spec(shape):
        # Block index never changes across the grid -> single buffer is enough
        # (double-buffering the weights only wastes VMEM headroom, esp. v7x).
        return pl.BlockSpec(shape, lambda b: (0, 0), pipeline_mode=pl.Buffered(1))

    return pl.pallas_call(
        kernel,
        out_shape=jax.ShapeDtypeStruct((B, S, C), out_dtype),
        grid_spec=pltpu.PrefetchScalarGridSpec(
            num_scalar_prefetch=0,
            grid=(B // block_b,),
            in_specs=[
                pl.BlockSpec((block_b, S, C), lambda b: (b, 0, 0)),  # activations
                const_spec((C, 3 * C)),                              # W_qkv (pre-transposed, q pre-scaled)
                const_spec((1, 3 * C)),                              # b_qkv (q pre-scaled)
                const_spec((C, C)),                                  # W_out (pre-transposed)
                const_spec((1, C)),                                  # b_out
            ],
            out_specs=pl.BlockSpec((block_b, S, C), lambda b: (b, 0, 0)),
        ),
        compiler_params=pltpu.CompilerParams(
            dimension_semantics=("parallel",),       # split batch blocks across TCs
            vmem_limit_bytes=48 * 1024 * 1024,       # fits v7x's 64 MiB/TC with headroom
        ),
    )(hidden_states, wqkv, bqkv, wo, bo)


def reference(hidden_states, params, *, num_heads):
    """Pure-JAX (f32) reference mirroring the PyTorch forward."""
    B, S, C = hidden_states.shape
    hd = C // num_heads
    scale = hd ** -0.5
    qkv = hidden_states @ params["wqkv"] + params["bqkv"].reshape(1, 1, 3 * C)
    qkv = qkv.reshape(B, S, 3, num_heads, hd).transpose(2, 0, 3, 1, 4)
    q, k, v = qkv[0], qkv[1], qkv[2]                                  # (B, NH, S, hd)
    s = jnp.einsum("bhqd,bhkd->bhqk", q, k) * scale
    p = jax.nn.softmax(s, axis=-1)
    ctx = jnp.einsum("bhqk,bhkd->bhqd", p, v).transpose(0, 2, 1, 3).reshape(B, S, C)
    return ctx @ params["wo"] + params["bo"].reshape(1, 1, C)


if __name__ == "__main__":
    # Small config consistent with the module (hidden_size=C, num_attention_heads=NH).
    # B=4 with block_b=2 exercises a multi-step grid with batch blocking.
    B, S, C, NH = 4, 8, 32, 4

    key = jax.random.PRNGKey(0)
    ks = jax.random.split(key, 5)
    nrm = lambda k, shape, scale=0.05: (scale * jax.random.normal(k, shape)).astype(jnp.float32)

    params = {
        "wqkv": nrm(ks[0], (C, 3 * C)),   # nn.Linear(C, 3C) weight, pre-transposed
        "bqkv": nrm(ks[1], (3 * C,)),
        "wo":   nrm(ks[2], (C, C)),       # TimesformerSelfOutput.dense, pre-transposed
        "bo":   nrm(ks[3], (C,)),
    }
    hidden_states = nrm(ks[4], (B, S, C), 1.0)

    out = timesformer_attention(hidden_states, params, num_heads=NH, block_b=2)
    out = jax.block_until_ready(out)

    ref = reference(hidden_states, params, num_heads=NH)
    assert out.shape == (B, S, C)
    # bf16 MXU operands with f32 accumulation + approx reciprocal softmax
    # -> looser tolerance vs the f32 reference (intended inference trade-off).
    assert jnp.allclose(out, ref, rtol=2e-2, atol=2e-2), "mismatch vs reference"

    print("KERNEL_OK")
</pallas_src>

<mosaic_0001>
module attributes {stable_mosaic.version = 11 : i64} {
  func.func @timesformer_attention_kernel(%arg0: i32, %arg1: memref<2x8x32xf32, #tpu.memory_space<vmem>>, %arg2: memref<32x96xbf16, #tpu.memory_space<vmem>>, %arg3: memref<1x96xf32, #tpu.memory_space<vmem>>, %arg4: memref<32x32xbf16, #tpu.memory_space<vmem>>, %arg5: memref<1x32xf32, #tpu.memory_space<vmem>>, %arg6: memref<2x8x32xf32, #tpu.memory_space<vmem>>) attributes {dimension_semantics = [#tpu.dimension_semantics<parallel>], iteration_bounds = array<i64: 2>, scalar_prefetch = 0 : i64, scratch_operands = 0 : i64, tpu.core_type = #tpu.core_type<tc>, window_params = [{transform_indices = @transform_0, window_bounds = array<i64: 2, 8, 32>}, {pipeline_mode = #tpu.pipeline_mode<synchronous>, transform_indices = @transform_1, window_bounds = array<i64: 32, 96>}, {pipeline_mode = #tpu.pipeline_mode<synchronous>, transform_indices = @transform_2, window_bounds = array<i64: 1, 96>}, {pipeline_mode = #tpu.pipeline_mode<synchronous>, transform_indices = @transform_3, window_bounds = array<i64: 32, 32>}, {pipeline_mode = #tpu.pipeline_mode<synchronous>, transform_indices = @transform_4, window_bounds = array<i64: 1, 32>}, {transform_indices = @transform_5, window_bounds = array<i64: 2, 8, 32>}]} {
    %c0 = arith.constant 0 : index
    %c0_0 = arith.constant 0 : index
    %c0_1 = arith.constant 0 : index
    %0 = vector.load %arg1[%c0, %c0_0, %c0_1] : memref<2x8x32xf32, #tpu.memory_space<vmem>>, vector<2x8x32xf32>
    %1 = vector.shape_cast %0 : vector<2x8x32xf32> to vector<16x32xf32>
    %2 = arith.truncf %1 : vector<16x32xf32> to vector<16x32xbf16>
    %c0_2 = arith.constant 0 : index
    %c0_3 = arith.constant 0 : index
    %3 = vector.load %arg2[%c0_2, %c0_3] : memref<32x96xbf16, #tpu.memory_space<vmem>>, vector<32x96xbf16>
    %cst = arith.constant dense<0.000000e+00> : vector<16x96xf32>
    %4 = tpu.matmul %2, %3, %cst {dimension_numbers = #tpu.dot_dimension_numbers<[1], [0], [0], [1], [0, 0, 1, 1], [], []>} : vector<16x32xbf16>, vector<32x96xbf16>, vector<16x96xf32> -> vector<16x96xf32>
    %c0_4 = arith.constant 0 : index
    %c0_5 = arith.constant 0 : index
    %5 = vector.load %arg3[%c0_4, %c0_5] : memref<1x96xf32, #tpu.memory_space<vmem>>, vector<1x96xf32>
    %6 = vector.broadcast %5 : vector<1x96xf32> to vector<16x96xf32>
    %7 = arith.addf %4, %6 : vector<16x96xf32>
    %c0_6 = arith.constant 0 : index
    %c0_7 = arith.constant 0 : index
    %8 = vector.load %arg5[%c0_6, %c0_7] : memref<1x32xf32, #tpu.memory_space<vmem>>, vector<1x32xf32>
    %9 = vector.extract_strided_slice %7 {offsets = [0, 0], sizes = [8, 96], strides = [1, 1]} : vector<16x96xf32> to vector<8x96xf32>
    %cst_8 = arith.constant 0.000000e+00 : f32
    %10 = vector.broadcast %cst_8 : f32 to vector<8x32xf32>
    %11 = vector.extract_strided_slice %9 {offsets = [0, 0], sizes = [8, 8], strides = [1, 1]} : vector<8x96xf32> to vector<8x8xf32>
    %12 = arith.truncf %11 : vector<8x8xf32> to vector<8x8xbf16>
    %13 = vector.extract_strided_slice %9 {offsets = [0, 32], sizes = [8, 8], strides = [1, 1]} : vector<8x96xf32> to vector<8x8xf32>
    %14 = arith.truncf %13 : vector<8x8xf32> to vector<8x8xbf16>
    %15 = vector.extract_strided_slice %9 {offsets = [0, 64], sizes = [8, 8], strides = [1, 1]} : vector<8x96xf32> to vector<8x8xf32>
    %16 = arith.truncf %15 : vector<8x8xf32> to vector<8x8xbf16>
    %cst_9 = arith.constant dense<0.000000e+00> : vector<8x8xf32>
    %17 = tpu.matmul %12, %14, %cst_9 {dimension_numbers = #tpu.dot_dimension_numbers<[1], [1], [0], [0], [0, 0, 1, 0], [], []>} : vector<8x8xbf16>, vector<8x8xbf16>, vector<8x8xf32> -> vector<8x8xf32>
    %cst_10 = arith.constant dense<0xFF800000> : vector<8xf32>
    %18 = vector.multi_reduction <maximumf>, %17, %cst_10 [1] : vector<8x8xf32> to vector<8xf32>
    %19 = vector.shape_cast %18 : vector<8xf32> to vector<8x1xf32>
    %20 = vector.broadcast %19 : vector<8x1xf32> to vector<8x8xf32>
    %21 = arith.subf %17, %20 : vector<8x8xf32>
    %22 = math.exp %21 : vector<8x8xf32>
    %cst_11 = arith.constant dense<0.000000e+00> : vector<8xf32>
    %23 = vector.multi_reduction <add>, %22, %cst_11 [1] : vector<8x8xf32> to vector<8xf32>
    %24 = vector.shape_cast %23 : vector<8xf32> to vector<8x1xf32>
    %25 = tpu.reciprocal %24 {approx = true} : vector<8x1xf32> -> vector<8x1xf32>
    %26 = vector.broadcast %25 : vector<8x1xf32> to vector<8x8xf32>
    %27 = arith.mulf %22, %26 : vector<8x8xf32>
    %28 = arith.truncf %27 : vector<8x8xf32> to vector<8x8xbf16>
    %cst_12 = arith.constant dense<0.000000e+00> : vector<8x8xf32>
    %29 = tpu.matmul %28, %16, %cst_12 {dimension_numbers = #tpu.dot_dimension_numbers<[1], [0], [0], [1], [0, 0, 1, 1], [], []>} : vector<8x8xbf16>, vector<8x8xbf16>, vector<8x8xf32> -> vector<8x8xf32>
    %30 = arith.truncf %29 : vector<8x8xf32> to vector<8x8xbf16>
    %c0_13 = arith.constant 0 : index
    %c0_14 = arith.constant 0 : index
    %31 = vector.load %arg4[%c0_13, %c0_14] : memref<32x32xbf16, #tpu.memory_space<vmem>>, vector<8x32xbf16>
    %cst_15 = arith.constant dense<0.000000e+00> : vector<8x32xf32>
    %32 = tpu.matmul %30, %31, %cst_15 {dimension_numbers = #tpu.dot_dimension_numbers<[1], [0], [0], [1], [0, 0, 1, 1], [], []>} : vector<8x8xbf16>, vector<8x32xbf16>, vector<8x32xf32> -> vector<8x32xf32>
    %33 = arith.addf %10, %32 : vector<8x32xf32>
    %34 = vector.extract_strided_slice %9 {offsets = [0, 8], sizes = [8, 8], strides = [1, 1]} : vector<8x96xf32> to vector<8x8xf32>
    %35 = arith.truncf %34 : vector<8x8xf32> to vector<8x8xbf16>
    %36 = vector.extract_strided_slice %9 {offsets = [0, 40], sizes = [8, 8], strides = [1, 1]} : vector<8x96xf32> to vector<8x8xf32>
    %37 = arith.truncf %36 : vector<8x8xf32> to vector<8x8xbf16>
    %38 = vector.extract_strided_slice %9 {offsets = [0, 72], sizes = [8, 8], strides = [1, 1]} : vector<8x96xf32> to vector<8x8xf32>
    %39 = arith.truncf %38 : vector<8x8xf32> to vector<8x8xbf16>
    %cst_16 = arith.constant dense<0.000000e+00> : vector<8x8xf32>
    %40 = tpu.matmul %35, %37, %cst_16 {dimension_numbers = #tpu.dot_dimension_numbers<[1], [1], [0], [0], [0, 0, 1, 0], [], []>} : vector<8x8xbf16>, vector<8x8xbf16>, vector<8x8xf32> -> vector<8x8xf32>
    %cst_17 = arith.constant dense<0xFF800000> : vector<8xf32>
    %41 = vector.multi_reduction <maximumf>, %40, %cst_17 [1] : vector<8x8xf32> to vector<8xf32>
    %42 = vector.shape_cast %41 : vector<8xf32> to vector<8x1xf32>
    %43 = vector.broadcast %42 : vector<8x1xf32> to vector<8x8xf32>
    %44 = arith.subf %40, %43 : vector<8x8xf32>
    %45 = math.exp %44 : vector<8x8xf32>
    %cst_18 = arith.constant dense<0.000000e+00> : vector<8xf32>
    %46 = vector.multi_reduction <add>, %45, %cst_18 [1] : vector<8x8xf32> to vector<8xf32>
    %47 = vector.shape_cast %46 : vector<8xf32> to vector<8x1xf32>
    %48 = tpu.reciprocal %47 {approx = true} : vector<8x1xf32> -> vector<8x1xf32>
    %49 = vector.broadcast %48 : vector<8x1xf32> to vector<8x8xf32>
    %50 = arith.mulf %45, %49 : vector<8x8xf32>
    %51 = arith.truncf %50 : vector<8x8xf32> to vector<8x8xbf16>
    %cst_19 = arith.constant dense<0.000000e+00> : vector<8x8xf32>
    %52 = tpu.matmul %51, %39, %cst_19 {dimension_numbers = #tpu.dot_dimension_numbers<[1], [0], [0], [1], [0, 0, 1, 1], [], []>} : vector<8x8xbf16>, vector<8x8xbf16>, vector<8x8xf32> -> vector<8x8xf32>
    %53 = arith.truncf %52 : vector<8x8xf32> to vector<8x8xbf16>
    %c8 = arith.constant 8 : index
    %c0_20 = arith.constant 0 : index
    %54 = vector.load %arg4[%c8, %c0_20] : memref<32x32xbf16, #tpu.memory_space<vmem>>, vector<8x32xbf16>
    %cst_21 = arith.constant dense<0.000000e+00> : vector<8x32xf32>
    %55 = tpu.matmul %53, %54, %cst_21 {dimension_numbers = #tpu.dot_dimension_numbers<[1], [0], [0], [1], [0, 0, 1, 1], [], []>} : vector<8x8xbf16>, vector<8x32xbf16>, vector<8x32xf32> -> vector<8x32xf32>
    %56 = arith.addf %33, %55 : vector<8x32xf32>
    %57 = vector.extract_strided_slice %9 {offsets = [0, 16], sizes = [8, 8], strides = [1, 1]} : vector<8x96xf32> to vector<8x8xf32>
    %58 = arith.truncf %57 : vector<8x8xf32> to vector<8x8xbf16>
    %59 = vector.extract_strided_slice %9 {offsets = [0, 48], sizes = [8, 8], strides = [1, 1]} : vector<8x96xf32> to vector<8x8xf32>
    %60 = arith.truncf %59 : vector<8x8xf32> to vector<8x8xbf16>
    %61 = vector.extract_strided_slice %9 {offsets = [0, 80], sizes = [8, 8], strides = [1, 1]} : vector<8x96xf32> to vector<8x8xf32>
    %62 = arith.truncf %61 : vector<8x8xf32> to vector<8x8xbf16>
    %cst_22 = arith.constant dense<0.000000e+00> : vector<8x8xf32>
    %63 = tpu.matmul %58, %60, %cst_22 {dimension_numbers = #tpu.dot_dimension_numbers<[1], [1], [0], [0], [0, 0, 1, 0], [], []>} : vector<8x8xbf16>, vector<8x8xbf16>, vector<8x8xf32> -> vector<8x8xf32>
    %cst_23 = arith.constant dense<0xFF800000> : vector<8xf32>
    %64 = vector.multi_reduction <maximumf>, %63, %cst_23 [1] : vector<8x8xf32> to vector<8xf32>
    %65 = vector.shape_cast %64 : vector<8xf32> to vector<8x1xf32>
    %66 = vector.broadcast %65 : vector<8x1xf32> to vector<8x8xf32>
    %67 = arith.subf %63, %66 : vector<8x8xf32>
    %68 = math.exp %67 : vector<8x8xf32>
    %cst_24 = arith.constant dense<0.000000e+00> : vector<8xf32>
    %69 = vector.multi_reduction <add>, %68, %cst_24 [1] : vector<8x8xf32> to vector<8xf32>
    %70 = vector.shape_cast %69 : vector<8xf32> to vector<8x1xf32>
    %71 = tpu.reciprocal %70 {approx = true} : vector<8x1xf32> -> vector<8x1xf32>
    %72 = vector.broadcast %71 : vector<8x1xf32> to vector<8x8xf32>
    %73 = arith.mulf %68, %72 : vector<8x8xf32>
    %74 = arith.truncf %73 : vector<8x8xf32> to vector<8x8xbf16>
    %cst_25 = arith.constant dense<0.000000e+00> : vector<8x8xf32>
    %75 = tpu.matmul %74, %62, %cst_25 {dimension_numbers = #tpu.dot_dimension_numbers<[1], [0], [0], [1], [0, 0, 1, 1], [], []>} : vector<8x8xbf16>, vector<8x8xbf16>, vector<8x8xf32> -> vector<8x8xf32>
    %76 = arith.truncf %75 : vector<8x8xf32> to vector<8x8xbf16>
    %c16 = arith.constant 16 : index
    %c0_26 = arith.constant 0 : index
    %77 = vector.load %arg4[%c16, %c0_26] : memref<32x32xbf16, #tpu.memory_space<vmem>>, vector<8x32xbf16>
    %cst_27 = arith.constant dense<0.000000e+00> : vector<8x32xf32>
    %78 = tpu.matmul %76, %77, %cst_27 {dimension_numbers = #tpu.dot_dimension_numbers<[1], [0], [0], [1], [0, 0, 1, 1], [], []>} : vector<8x8xbf16>, vector<8x32xbf16>, vector<8x32xf32> -> vector<8x32xf32>
    %79 = arith.addf %56, %78 : vector<8x32xf32>
    %80 = vector.extract_strided_slice %9 {offsets = [0, 24], sizes = [8, 8], strides = [1, 1]} : vector<8x96xf32> to vector<8x8xf32>
    %81 = arith.truncf %80 : vector<8x8xf32> to vector<8x8xbf16>
    %82 = vector.extract_strided_slice %9 {offsets = [0, 56], sizes = [8, 8], strides = [1, 1]} : vector<8x96xf32> to vector<8x8xf32>
    %83 = arith.truncf %82 : vector<8x8xf32> to vector<8x8xbf16>
    %84 = vector.extract_strided_slice %9 {offsets = [0, 88], sizes = [8, 8], strides = [1, 1]} : vector<8x96xf32> to vector<8x8xf32>
    %85 = arith.truncf %84 : vector<8x8xf32> to vector<8x8xbf16>
    %cst_28 = arith.constant dense<0.000000e+00> : vector<8x8xf32>
    %86 = tpu.matmul %81, %83, %cst_28 {dimension_numbers = #tpu.dot_dimension_numbers<[1], [1], [0], [0], [0, 0, 1, 0], [], []>} : vector<8x8xbf16>, vector<8x8xbf16>, vector<8x8xf32> -> vector<8x8xf32>
    %cst_29 = arith.constant dense<0xFF800000> : vector<8xf32>
    %87 = vector.multi_reduction <maximumf>, %86, %cst_29 [1] : vector<8x8xf32> to vector<8xf32>
    %88 = vector.shape_cast %87 : vector<8xf32> to vector<8x1xf32>
    %89 = vector.broadcast %88 : vector<8x1xf32> to vector<8x8xf32>
    %90 = arith.subf %86, %89 : vector<8x8xf32>
    %91 = math.exp %90 : vector<8x8xf32>
    %cst_30 = arith.constant dense<0.000000e+00> : vector<8xf32>
    %92 = vector.multi_reduction <add>, %91, %cst_30 [1] : vector<8x8xf32> to vector<8xf32>
    %93 = vector.shape_cast %92 : vector<8xf32> to vector<8x1xf32>
    %94 = tpu.reciprocal %93 {approx = true} : vector<8x1xf32> -> vector<8x1xf32>
    %95 = vector.broadcast %94 : vector<8x1xf32> to vector<8x8xf32>
    %96 = arith.mulf %91, %95 : vector<8x8xf32>
    %97 = arith.truncf %96 : vector<8x8xf32> to vector<8x8xbf16>
    %cst_31 = arith.constant dense<0.000000e+00> : vector<8x8xf32>
    %98 = tpu.matmul %97, %85, %cst_31 {dimension_numbers = #tpu.dot_dimension_numbers<[1], [0], [0], [1], [0, 0, 1, 1], [], []>} : vector<8x8xbf16>, vector<8x8xbf16>, vector<8x8xf32> -> vector<8x8xf32>
    %99 = arith.truncf %98 : vector<8x8xf32> to vector<8x8xbf16>
    %c24 = arith.constant 24 : index
    %c0_32 = arith.constant 0 : index
    %100 = vector.load %arg4[%c24, %c0_32] : memref<32x32xbf16, #tpu.memory_space<vmem>>, vector<8x32xbf16>
    %cst_33 = arith.constant dense<0.000000e+00> : vector<8x32xf32>
    %101 = tpu.matmul %99, %100, %cst_33 {dimension_numbers = #tpu.dot_dimension_numbers<[1], [0], [0], [1], [0, 0, 1, 1], [], []>} : vector<8x8xbf16>, vector<8x32xbf16>, vector<8x32xf32> -> vector<8x32xf32>
    %102 = arith.addf %79, %101 : vector<8x32xf32>
    %103 = vector.broadcast %8 : vector<1x32xf32> to vector<8x32xf32>
    %104 = arith.addf %102, %103 : vector<8x32xf32>
    %c0_34 = arith.constant 0 : index
    %c0_35 = arith.constant 0 : index
    %c0_36 = arith.constant 0 : index
    %105 = vector.load %arg6[%c0_34, %c0_35, %c0_36] : memref<2x8x32xf32, #tpu.memory_space<vmem>>, vector<1x8x32xf32>
    %106 = vector.shape_cast %105 : vector<1x8x32xf32> to vector<8x32xf32>
    %107 = vector.shape_cast %104 : vector<8x32xf32> to vector<1x8x32xf32>
    tpu.vector_store %arg6[%c0_34, %c0_35, %c0_36], %107 {strides = array<i32>} : memref<2x8x32xf32, #tpu.memory_space<vmem>>, vector<1x8x32xf32>,
    %108 = vector.extract_strided_slice %7 {offsets = [8, 0], sizes = [8, 96], strides = [1, 1]} : vector<16x96xf32> to vector<8x96xf32>
    %cst_37 = arith.constant 0.000000e+00 : f32
    %109 = vector.broadcast %cst_37 : f32 to vector<8x32xf32>
    %110 = vector.extract_strided_slice %108 {offsets = [0, 0], sizes = [8, 8], strides = [1, 1]} : vector<8x96xf32> to vector<8x8xf32>
    %111 = arith.truncf %110 : vector<8x8xf32> to vector<8x8xbf16>
    %112 = vector.extract_strided_slice %108 {offsets = [0, 32], sizes = [8, 8], strides = [1, 1]} : vector<8x96xf32> to vector<8x8xf32>
    %113 = arith.truncf %112 : vector<8x8xf32> to vector<8x8xbf16>
    %114 = vector.extract_strided_slice %108 {offsets = [0, 64], sizes = [8, 8], strides = [1, 1]} : vector<8x96xf32> to vector<8x8xf32>
    %115 = arith.truncf %114 : vector<8x8xf32> to vector<8x8xbf16>
    %cst_38 = arith.constant dense<0.000000e+00> : vector<8x8xf32>
    %116 = tpu.matmul %111, %113, %cst_38 {dimension_numbers = #tpu.dot_dimension_numbers<[1], [1], [0], [0], [0, 0, 1, 0], [], []>} : vector<8x8xbf16>, vector<8x8xbf16>, vector<8x8xf32> -> vector<8x8xf32>
    %cst_39 = arith.constant dense<0xFF800000> : vector<8xf32>
    %117 = vector.multi_reduction <maximumf>, %116, %cst_39 [1] : vector<8x8xf32> to vector<8xf32>
    %118 = vector.shape_cast %117 : vector<8xf32> to vector<8x1xf32>
    %119 = vector.broadcast %118 : vector<8x1xf32> to vector<8x8xf32>
    %120 = arith.subf %116, %119 : vector<8x8xf32>
    %121 = math.exp %120 : vector<8x8xf32>
    %cst_40 = arith.constant dense<0.000000e+00> : vector<8xf32>
    %122 = vector.multi_reduction <add>, %121, %cst_40 [1] : vector<8x8xf32> to vector<8xf32>
    %123 = vector.shape_cast %122 : vector<8xf32> to vector<8x1xf32>
    %124 = tpu.reciprocal %123 {approx = true} : vector<8x1xf32> -> vector<8x1xf32>
    %125 = vector.broadcast %124 : vector<8x1xf32> to vector<8x8xf32>
    %126 = arith.mulf %121, %125 : vector<8x8xf32>
    %127 = arith.truncf %126 : vector<8x8xf32> to vector<8x8xbf16>
    %cst_41 = arith.constant dense<0.000000e+00> : vector<8x8xf32>
    %128 = tpu.matmul %127, %115, %cst_41 {dimension_numbers = #tpu.dot_dimension_numbers<[1], [0], [0], [1], [0, 0, 1, 1], [], []>} : vector<8x8xbf16>, vector<8x8xbf16>, vector<8x8xf32> -> vector<8x8xf32>
    %129 = arith.truncf %128 : vector<8x8xf32> to vector<8x8xbf16>
    %c0_42 = arith.constant 0 : index
    %c0_43 = arith.constant 0 : index
    %130 = vector.load %arg4[%c0_42, %c0_43] : memref<32x32xbf16, #tpu.memory_space<vmem>>, vector<8x32xbf16>
    %cst_44 = arith.constant dense<0.000000e+00> : vector<8x32xf32>
    %131 = tpu.matmul %129, %130, %cst_44 {dimension_numbers = #tpu.dot_dimension_numbers<[1], [0], [0], [1], [0, 0, 1, 1], [], []>} : vector<8x8xbf16>, vector<8x32xbf16>, vector<8x32xf32> -> vector<8x32xf32>
    %132 = arith.addf %109, %131 : vector<8x32xf32>
    %133 = vector.extract_strided_slice %108 {offsets = [0, 8], sizes = [8, 8], strides = [1, 1]} : vector<8x96xf32> to vector<8x8xf32>
    %134 = arith.truncf %133 : vector<8x8xf32> to vector<8x8xbf16>
    %135 = vector.extract_strided_slice %108 {offsets = [0, 40], sizes = [8, 8], strides = [1, 1]} : vector<8x96xf32> to vector<8x8xf32>
    %136 = arith.truncf %135 : vector<8x8xf32> to vector<8x8xbf16>
    %137 = vector.extract_strided_slice %108 {offsets = [0, 72], sizes = [8, 8], strides = [1, 1]} : vector<8x96xf32> to vector<8x8xf32>
    %138 = arith.truncf %137 : vector<8x8xf32> to vector<8x8xbf16>
    %cst_45 = arith.constant dense<0.000000e+00> : vector<8x8xf32>
    %139 = tpu.matmul %134, %136, %cst_45 {dimension_numbers = #tpu.dot_dimension_numbers<[1], [1], [0], [0], [0, 0, 1, 0], [], []>} : vector<8x8xbf16>, vector<8x8xbf16>, vector<8x8xf32> -> vector<8x8xf32>
    %cst_46 = arith.constant dense<0xFF800000> : vector<8xf32>
    %140 = vector.multi_reduction <maximumf>, %139, %cst_46 [1] : vector<8x8xf32> to vector<8xf32>
    %141 = vector.shape_cast %140 : vector<8xf32> to vector<8x1xf32>
    %142 = vector.broadcast %141 : vector<8x1xf32> to vector<8x8xf32>
    %143 = arith.subf %139, %142 : vector<8x8xf32>
    %144 = math.exp %143 : vector<8x8xf32>
    %cst_47 = arith.constant dense<0.000000e+00> : vector<8xf32>
    %145 = vector.multi_reduction <add>, %144, %cst_47 [1] : vector<8x8xf32> to vector<8xf32>
    %146 = vector.shape_cast %145 : vector<8xf32> to vector<8x1xf32>
    %147 = tpu.reciprocal %146 {approx = true} : vector<8x1xf32> -> vector<8x1xf32>
    %148 = vector.broadcast %147 : vector<8x1xf32> to vector<8x8xf32>
    %149 = arith.mulf %144, %148 : vector<8x8xf32>
    %150 = arith.truncf %149 : vector<8x8xf32> to vector<8x8xbf16>
    %cst_48 = arith.constant dense<0.000000e+00> : vector<8x8xf32>
    %151 = tpu.matmul %150, %138, %cst_48 {dimension_numbers = #tpu.dot_dimension_numbers<[1], [0], [0], [1], [0, 0, 1, 1], [], []>} : vector<8x8xbf16>, vector<8x8xbf16>, vector<8x8xf32> -> vector<8x8xf32>
    %152 = arith.truncf %151 : vector<8x8xf32> to vector<8x8xbf16>
    %c8_49 = arith.constant 8 : index
    %c0_50 = arith.constant 0 : index
    %153 = vector.load %arg4[%c8_49, %c0_50] : memref<32x32xbf16, #tpu.memory_space<vmem>>, vector<8x32xbf16>
    %cst_51 = arith.constant dense<0.000000e+00> : vector<8x32xf32>
    %154 = tpu.matmul %152, %153, %cst_51 {dimension_numbers = #tpu.dot_dimension_numbers<[1], [0], [0], [1], [0, 0, 1, 1], [], []>} : vector<8x8xbf16>, vector<8x32xbf16>, vector<8x32xf32> -> vector<8x32xf32>
    %155 = arith.addf %132, %154 : vector<8x32xf32>
    %156 = vector.extract_strided_slice %108 {offsets = [0, 16], sizes = [8, 8], strides = [1, 1]} : vector<8x96xf32> to vector<8x8xf32>
    %157 = arith.truncf %156 : vector<8x8xf32> to vector<8x8xbf16>
    %158 = vector.extract_strided_slice %108 {offsets = [0, 48], sizes = [8, 8], strides = [1, 1]} : vector<8x96xf32> to vector<8x8xf32>
    %159 = arith.truncf %158 : vector<8x8xf32> to vector<8x8xbf16>
    %160 = vector.extract_strided_slice %108 {offsets = [0, 80], sizes = [8, 8], strides = [1, 1]} : vector<8x96xf32> to vector<8x8xf32>
    %161 = arith.truncf %160 : vector<8x8xf32> to vector<8x8xbf16>
    %cst_52 = arith.constant dense<0.000000e+00> : vector<8x8xf32>
    %162 = tpu.matmul %157, %159, %cst_52 {dimension_numbers = #tpu.dot_dimension_numbers<[1], [1], [0], [0], [0, 0, 1, 0], [], []>} : vector<8x8xbf16>, vector<8x8xbf16>, vector<8x8xf32> -> vector<8x8xf32>
    %cst_53 = arith.constant dense<0xFF800000> : vector<8xf32>
    %163 = vector.multi_reduction <maximumf>, %162, %cst_53 [1] : vector<8x8xf32> to vector<8xf32>
    %164 = vector.shape_cast %163 : vector<8xf32> to vector<8x1xf32>
    %165 = vector.broadcast %164 : vector<8x1xf32> to vector<8x8xf32>
    %166 = arith.subf %162, %165 : vector<8x8xf32>
    %167 = math.exp %166 : vector<8x8xf32>
    %cst_54 = arith.constant dense<0.000000e+00> : vector<8xf32>
    %168 = vector.multi_reduction <add>, %167, %cst_54 [1] : vector<8x8xf32> to vector<8xf32>
    %169 = vector.shape_cast %168 : vector<8xf32> to vector<8x1xf32>
    %170 = tpu.reciprocal %169 {approx = true} : vector<8x1xf32> -> vector<8x1xf32>
    %171 = vector.broadcast %170 : vector<8x1xf32> to vector<8x8xf32>
    %172 = arith.mulf %167, %171 : vector<8x8xf32>
    %173 = arith.truncf %172 : vector<8x8xf32> to vector<8x8xbf16>
    %cst_55 = arith.constant dense<0.000000e+00> : vector<8x8xf32>
    %174 = tpu.matmul %173, %161, %cst_55 {dimension_numbers = #tpu.dot_dimension_numbers<[1], [0], [0], [1], [0, 0, 1, 1], [], []>} : vector<8x8xbf16>, vector<8x8xbf16>, vector<8x8xf32> -> vector<8x8xf32>
    %175 = arith.truncf %174 : vector<8x8xf32> to vector<8x8xbf16>
    %c16_56 = arith.constant 16 : index
    %c0_57 = arith.constant 0 : index
    %176 = vector.load %arg4[%c16_56, %c0_57] : memref<32x32xbf16, #tpu.memory_space<vmem>>, vector<8x32xbf16>
    %cst_58 = arith.constant dense<0.000000e+00> : vector<8x32xf32>
    %177 = tpu.matmul %175, %176, %cst_58 {dimension_numbers = #tpu.dot_dimension_numbers<[1], [0], [0], [1], [0, 0, 1, 1], [], []>} : vector<8x8xbf16>, vector<8x32xbf16>, vector<8x32xf32> -> vector<8x32xf32>
    %178 = arith.addf %155, %177 : vector<8x32xf32>
    %179 = vector.extract_strided_slice %108 {offsets = [0, 24], sizes = [8, 8], strides = [1, 1]} : vector<8x96xf32> to vector<8x8xf32>
    %180 = arith.truncf %179 : vector<8x8xf32> to vector<8x8xbf16>
    %181 = vector.extract_strided_slice %108 {offsets = [0, 56], sizes = [8, 8], strides = [1, 1]} : vector<8x96xf32> to vector<8x8xf32>
    %182 = arith.truncf %181 : vector<8x8xf32> to vector<8x8xbf16>
    %183 = vector.extract_strided_slice %108 {offsets = [0, 88], sizes = [8, 8], strides = [1, 1]} : vector<8x96xf32> to vector<8x8xf32>
    %184 = arith.truncf %183 : vector<8x8xf32> to vector<8x8xbf16>
    %cst_59 = arith.constant dense<0.000000e+00> : vector<8x8xf32>
    %185 = tpu.matmul %180, %182, %cst_59 {dimension_numbers = #tpu.dot_dimension_numbers<[1], [1], [0], [0], [0, 0, 1, 0], [], []>} : vector<8x8xbf16>, vector<8x8xbf16>, vector<8x8xf32> -> vector<8x8xf32>
    %cst_60 = arith.constant dense<0xFF800000> : vector<8xf32>
    %186 = vector.multi_reduction <maximumf>, %185, %cst_60 [1] : vector<8x8xf32> to vector<8xf32>
    %187 = vector.shape_cast %186 : vector<8xf32> to vector<8x1xf32>
    %188 = vector.broadcast %187 : vector<8x1xf32> to vector<8x8xf32>
    %189 = arith.subf %185, %188 : vector<8x8xf32>
    %190 = math.exp %189 : vector<8x8xf32>
    %cst_61 = arith.constant dense<0.000000e+00> : vector<8xf32>
    %191 = vector.multi_reduction <add>, %190, %cst_61 [1] : vector<8x8xf32> to vector<8xf32>
    %192 = vector.shape_cast %191 : vector<8xf32> to vector<8x1xf32>
    %193 = tpu.reciprocal %192 {approx = true} : vector<8x1xf32> -> vector<8x1xf32>
    %194 = vector.broadcast %193 : vector<8x1xf32> to vector<8x8xf32>
    %195 = arith.mulf %190, %194 : vector<8x8xf32>
    %196 = arith.truncf %195 : vector<8x8xf32> to vector<8x8xbf16>
    %cst_62 = arith.constant dense<0.000000e+00> : vector<8x8xf32>
    %197 = tpu.matmul %196, %184, %cst_62 {dimension_numbers = #tpu.dot_dimension_numbers<[1], [0], [0], [1], [0, 0, 1, 1], [], []>} : vector<8x8xbf16>, vector<8x8xbf16>, vector<8x8xf32> -> vector<8x8xf32>
    %198 = arith.truncf %197 : vector<8x8xf32> to vector<8x8xbf16>
    %c24_63 = arith.constant 24 : index
    %c0_64 = arith.constant 0 : index
    %199 = vector.load %arg4[%c24_63, %c0_64] : memref<32x32xbf16, #tpu.memory_space<vmem>>, vector<8x32xbf16>
    %cst_65 = arith.constant dense<0.000000e+00> : vector<8x32xf32>
    %200 = tpu.matmul %198, %199, %cst_65 {dimension_numbers = #tpu.dot_dimension_numbers<[1], [0], [0], [1], [0, 0, 1, 1], [], []>} : vector<8x8xbf16>, vector<8x32xbf16>, vector<8x32xf32> -> vector<8x32xf32>
    %201 = arith.addf %178, %200 : vector<8x32xf32>
    %202 = vector.broadcast %8 : vector<1x32xf32> to vector<8x32xf32>
    %203 = arith.addf %201, %202 : vector<8x32xf32>
    %c1 = arith.constant 1 : index
    %c0_66 = arith.constant 0 : index
    %c0_67 = arith.constant 0 : index
    %204 = vector.load %arg6[%c1, %c0_66, %c0_67] : memref<2x8x32xf32, #tpu.memory_space<vmem>>, vector<1x8x32xf32>
    %205 = vector.shape_cast %204 : vector<1x8x32xf32> to vector<8x32xf32>
    %206 = vector.shape_cast %203 : vector<8x32xf32> to vector<1x8x32xf32>
    tpu.vector_store %arg6[%c1, %c0_66, %c0_67], %206 {strides = array<i32>} : memref<2x8x32xf32, #tpu.memory_space<vmem>>, vector<1x8x32xf32>,
    return
  }
  func.func @transform_0(%arg0: i32) -> (i32, i32, i32) {
    %c0_i32 = arith.constant 0 : i32
    %c0_i32_0 = arith.constant 0 : i32
    %c0_i32_1 = arith.constant 0 : i32
    return %arg0, %c0_i32, %c0_i32_0 : i32, i32, i32
  }
  func.func @transform_1(%arg0: i32) -> (i32, i32) {
    %c0_i32 = arith.constant 0 : i32
    %c0_i32_0 = arith.constant 0 : i32
    %c0_i32_1 = arith.constant 0 : i32
    return %c0_i32, %c0_i32_0 : i32, i32
  }
  func.func @transform_2(%arg0: i32) -> (i32, i32) {
    %c0_i32 = arith.constant 0 : i32
    %c0_i32_0 = arith.constant 0 : i32
    %c0_i32_1 = arith.constant 0 : i32
    return %c0_i32, %c0_i32_0 : i32, i32
  }
  func.func @transform_3(%arg0: i32) -> (i32, i32) {
    %c0_i32 = arith.constant 0 : i32
    %c0_i32_0 = arith.constant 0 : i32
    %c0_i32_1 = arith.constant 0 : i32
    return %c0_i32, %c0_i32_0 : i32, i32
  }
  func.func @transform_4(%arg0: i32) -> (i32, i32) {
    %c0_i32 = arith.constant 0 : i32
    %c0_i32_0 = arith.constant 0 : i32
    %c0_i32_1 = arith.constant 0 : i32
    return %c0_i32, %c0_i32_0 : i32, i32
  }
  func.func @transform_5(%arg0: i32) -> (i32, i32, i32) {
    %c0_i32 = arith.constant 0 : i32
    %c0_i32_0 = arith.constant 0 : i32
    %c0_i32_1 = arith.constant 0 : i32
    return %arg0, %c0_i32, %c0_i32_0 : i32, i32, i32
  }
}

</mosaic_0001>

<llo_original>
// kernel: tpu_custom_call.1
$region0: #{tpu_custom_call.1}
  #allocation0 [shape = 'u32[]', space=smem, size = 0x4, offset = 0x4, fixed_abs, tag = 'smem constant byte address 0x4 - core index']
  #allocation1 [shape = 'u32[144,128]{1,0:T(1,128)}', space=vmem, size = 0x12000, scoped, tag = 'internal scratch']
  %s0 = inlined_call_operand.hbm [shape: f32[4,8,32], index: 0, kind: input, shape index: {}]
  %s1 = inlined_call_operand.hbm [shape: bf16[32,96], index: 1, kind: input, shape index: {}]
  %s2 = inlined_call_operand.vmem [shape: f32[1,96], index: 2, kind: input, shape index: {}]
  %s3 = inlined_call_operand.hbm [shape: bf16[32,32], index: 3, kind: input, shape index: {}]
  %s4 = inlined_call_operand.vmem [shape: f32[1,32], index: 4, kind: input, shape index: {}]
  %s5 = inlined_call_operand.hbm [shape: f32[4,8,32], index: 5, kind: output, shape index: {}]
  %s6 = sld [smem:[#allocation0]]
  $region65: #{tpu_custom_call.1} parent=0
    _
  %s8 = ssub.s32 1, %s6
  %s9 = scalar_select 0, %s8, %s6
  $region1: #{tpu_custom_call.1} parent=0
    #allocation2 [shape = 'u8[16384]{0}', space=vmem, size = 0x4000, scoped, tag = 'input window, operand 0']
    #allocation3 [shape = 's32[2]{0}', space=sflag, size = 0x8, scoped, tag = 'scoped memory for tpu_custom_call.1']
    #allocation4 [shape = 's32[2]{0}', space=sflag, size = 0x8, scoped, tag = 'scoped memory for tpu_custom_call.1']
    #allocation5 [shape = 'u8[8192]{0}', space=vmem, size = 0x2000, scoped, tag = 'input window, operand 1, single buffered']
    #allocation6 [shape = 's32[1]{0}', space=sflag, size = 0x4, scoped, tag = 'scoped memory for tpu_custom_call.1']
    #allocation7 [shape = 'u8[8192]{0}', space=vmem, size = 0x2000, scoped, tag = 'input window, operand 3, single buffered']
    #allocation8 [shape = 'u8[16384]{0}', space=vmem, size = 0x4000, scoped, tag = 'output window, operand 0']
    %10 = vsyncpa [#allocation3], 0
    %s11 = scalar_lea.sflag [#allocation3], 1
    %12 = vsyncpa %s11, 0
    %13 = vsyncpa [#allocation6], 0
    %14 = vsyncpa [#allocation4], 0
    %s15 = scalar_lea.sflag [#allocation4], 1
    %16 = vsyncpa %s15, 0
    loop: start=0, step=1, limit=4
    $region2: #{tpu_custom_call.1} parent=1 // loop_pre_header
      _
    $region3: #{tpu_custom_call.1} parent=1 // loop_header
      %s18 = sphi 0, %s22
      %p19 = scmp.ge.s32.totalorder %s18, 4
      %s28 = sphi 0, %s30
      %s31 = sphi 0, %s28
      %s32 = sphi 0, %s31
      %s48 = sphi 0, %s32
      %s52 = sphi 0, %s52
      %s54 = sphi 0, %s52
      %s55 = sphi 0, %s54
      %s69 = sphi 0, %s55
      %s73 = sphi 0, %s73
      %s75 = sphi 0, %s73
      %s76 = sphi 0, %s75
      %s90 = sphi 0, %s76
      %s94 = sphi 0, %s94
      %s96 = sphi 0, %s94
      %s97 = sphi 0, %s96
      %s111 = sphi 0, %s97
      %s115 = sphi 0, %s115
      %s117 = sphi 0, %s115
      %s118 = sphi 0, %s117
      %s132 = sphi 0, %s118
      %s138 = sphi 0, %s140
      %s141 = sphi 0, %s138
      %s142 = sphi 0, %s141
      %s158 = sphi 0, %s142
    $region4: #{tpu_custom_call.1} parent=1 // loop_header_branch
      %21 = sbr.rel (%p19) target = $region8
    $region5: #{tpu_custom_call.1} parent=1 // loop_body
      %s23 = ssub.s32 %s18, 1
      %s24 = ssub.s32 %s18, 2
      %s25 = sadd.s32 %s18, 1
      %s26 = ssub.s32 %s18, %s25
      %p27 = scmp.eq.s32.totalorder %s26, 0
      %s29 = sadd.s32 %s28, 1
      %s30 = scalar_select %p27, %s28, %s29
      %p33 = pneg %p27
      %p34 = scmp.eq.s32.totalorder %s18, 1
      %p35 = por %p33, %p34
      %p36 = scmp.ne.s32.totalorder %s28, %s31
      %p37 = scmp.eq.s32.totalorder %s18, 0
      %p38 = por %p36, %p37
      %p39 = scmp.ne.s32.totalorder %s28, %s31
      %p40 = scmp.eq.s32.totalorder %s23, 1
      %p41 = por %p39, %p40
      %p42 = scmp.ne.s32.totalorder %s31, %s32
      %p43 = scmp.eq.s32.totalorder %s23, 0
      %p44 = por %p42, %p43
      %p45 = scmp.ne.s32.totalorder %s31, %s32
      %p46 = scmp.eq.s32.totalorder %s24, 1
      %p47 = por %p45, %p46
      %p49 = scmp.ne.s32.totalorder %s32, %s48
      %p50 = scmp.eq.s32.totalorder %s24, 0
      %p51 = por %p49, %p50
      %s53 = sadd.s32 %s52, 1
      %p56 = scmp.eq.s32.totalorder %s18, 1
      %p57 = scmp.ne.s32.totalorder %s52, %s54
      %p58 = scmp.eq.s32.totalorder %s18, 0
      %p59 = por %p57, %p58
      %p60 = scmp.ne.s32.totalorder %s52, %s54
      %p61 = scmp.eq.s32.totalorder %s23, 1
      %p62 = por %p60, %p61
      %p63 = scmp.ne.s32.totalorder %s54, %s55
      %p64 = scmp.eq.s32.totalorder %s23, 0
      %p65 = por %p63, %p64
      %p66 = scmp.ne.s32.totalorder %s54, %s55
      %p67 = scmp.eq.s32.totalorder %s24, 1
      %p68 = por %p66, %p67
      %p70 = scmp.ne.s32.totalorder %s55, %s69
      %p71 = scmp.eq.s32.totalorder %s24, 0
      %p72 = por %p70, %p71
      %s74 = sadd.s32 %s73, 1
      %p77 = scmp.eq.s32.totalorder %s18, 1
      %p78 = scmp.ne.s32.totalorder %s73, %s75
      %p79 = scmp.eq.s32.totalorder %s18, 0
      %p80 = por %p78, %p79
      %p81 = scmp.ne.s32.totalorder %s73, %s75
      %p82 = scmp.eq.s32.totalorder %s23, 1
      %p83 = por %p81, %p82
      %p84 = scmp.ne.s32.totalorder %s75, %s76
      %p85 = scmp.eq.s32.totalorder %s23, 0
      %p86 = por %p84, %p85
      %p87 = scmp.ne.s32.totalorder %s75, %s76
      %p88 = scmp.eq.s32.totalorder %s24, 1
      %p89 = por %p87, %p88
      %p91 = scmp.ne.s32.totalorder %s76, %s90
      %p92 = scmp.eq.s32.totalorder %s24, 0
      %p93 = por %p91, %p92
      %s95 = sadd.s32 %s94, 1
      %p98 = scmp.eq.s32.totalorder %s18, 1
      %p99 = scmp.ne.s32.totalorder %s94, %s96
      %p100 = scmp.eq.s32.totalorder %s18, 0
      %p101 = por %p99, %p100
      %p102 = scmp.ne.s32.totalorder %s94, %s96
      %p103 = scmp.eq.s32.totalorder %s23, 1
      %p104 = por %p102, %p103
      %p105 = scmp.ne.s32.totalorder %s96, %s97
      %p106 = scmp.eq.s32.totalorder %s23, 0
      %p107 = por %p105, %p106
      %p108 = scmp.ne.s32.totalorder %s96, %s97
      %p109 = scmp.eq.s32.totalorder %s24, 1
      %p110 = por %p108, %p109
      %p112 = scmp.ne.s32.totalorder %s97, %s111
      %p113 = scmp.eq.s32.totalorder %s24, 0
      %p114 = por %p112, %p113
      %s116 = sadd.s32 %s115, 1
      %p119 = scmp.eq.s32.totalorder %s18, 1
      %p120 = scmp.ne.s32.totalorder %s115, %s117
      %p121 = scmp.eq.s32.totalorder %s18, 0
      %p122 = por %p120, %p121
      %p123 = scmp.ne.s32.totalorder %s115, %s117
      %p124 = scmp.eq.s32.totalorder %s23, 1
      %p125 = por %p123, %p124
      %p126 = scmp.ne.s32.totalorder %s117, %s118
      %p127 = scmp.eq.s32.totalorder %s23, 0
      %p128 = por %p126, %p127
      %p129 = scmp.ne.s32.totalorder %s117, %s118
      %p130 = scmp.eq.s32.totalorder %s24, 1
      %p131 = por %p129, %p130
      %p133 = scmp.ne.s32.totalorder %s118, %s132
      %p134 = scmp.eq.s32.totalorder %s24, 0
      %p135 = por %p133, %p134
      %s136 = ssub.s32 %s18, %s25
      %p137 = scmp.eq.s32.totalorder %s136, 0
      %s139 = sadd.s32 %s138, 1
      %s140 = scalar_select %p137, %s138, %s139
      %p143 = pneg %p137
      %p144 = scmp.eq.s32.totalorder %s18, 1
      %p145 = por %p143, %p144
      %p146 = scmp.ne.s32.totalorder %s138, %s141
      %p147 = scmp.eq.s32.totalorder %s18, 0
      %p148 = por %p146, %p147
      %p149 = scmp.ne.s32.totalorder %s138, %s141
      %p150 = scmp.eq.s32.totalorder %s23, 1
      %p151 = por %p149, %p150
      %p152 = scmp.ne.s32.totalorder %s141, %s142
      %p153 = scmp.eq.s32.totalorder %s23, 0
      %p154 = por %p152, %p153
      %p155 = scmp.ne.s32.totalorder %s141, %s142
      %p156 = scmp.eq.s32.totalorder %s24, 1
      %p157 = por %p155, %p156
      %p159 = scmp.ne.s32.totalorder %s142, %s158
      %p160 = scmp.eq.s32.totalorder %s24, 0
      %p161 = por %p159, %p160
      %p162 = scmp.le.s32.totalorder 1, %s18
      %p163 = scmp.lt.s32.totalorder %s18, 3
      %p164 = pnand %p162, %p163
      %p165 = pneg %p164
      // Predicated region
      $region9: #{tpu_custom_call.1} parent=5 // pred_check
        _
      $region10: #{tpu_custom_call.1} parent=5 // pred_check_branch
        %167 = sbr.rel (%p164) target = $region12
      $region11: #{tpu_custom_call.1} parent=5 // pred_region
        %s168 = ssub.s32 %s18, 1
        // Predicated region
        $region13: #{tpu_custom_call.1} parent=11 // pred_check
          %p169 = pneg %p65
        $region14: #{tpu_custom_call.1} parent=11 // pred_check_branch
          %171 = sbr.rel (%p169) target = $region16
        $region15: #{tpu_custom_call.1} parent=11 // pred_region
          %s173 = ssub.s32 256, 256
          %174 = vsyncadd [#allocation6], %s173
          %s175 = sshll.u32 [#allocation5], 4
          %s176 = int_to_ptr.vmem [resolvable:$true] %s175
          %181 = dma.hbm_to_vmem [thread:$0]  %s1, 256, %s176, [#allocation6], 64, 64, 4
        $region16: #{tpu_custom_call.1} parent=11 // pred_fallthru
          _
        // Predicated region
        $region17: #{tpu_custom_call.1} parent=11 // pred_check
          %p182 = pneg %p86
        $region18: #{tpu_custom_call.1} parent=11 // pred_check_branch
          %184 = sbr.rel (%p182) target = $region20
        $region19: #{tpu_custom_call.1} parent=11 // pred_region
          _
        $region20: #{tpu_custom_call.1} parent=11 // pred_fallthru
          _
        // Predicated region
        $region21: #{tpu_custom_call.1} parent=11 // pred_check
          %p185 = pneg %p107
        $region22: #{tpu_custom_call.1} parent=11 // pred_check_branch
          %187 = sbr.rel (%p185) target = $region24
        $region23: #{tpu_custom_call.1} parent=11 // pred_region
          %s189 = ssub.s32 256, 256
          %190 = vsyncadd [#allocation6], %s189
          %s191 = sshll.u32 [#allocation7], 4
          %s192 = int_to_ptr.vmem [resolvable:$true] %s191
          %197 = dma.hbm_to_vmem [thread:$0]  %s3, 256, %s192, [#allocation6], 64, 64, 4
        $region24: #{tpu_custom_call.1} parent=11 // pred_fallthru
          _
        // Predicated region
        $region25: #{tpu_custom_call.1} parent=11 // pred_check
          %p198 = pneg %p128
        $region26: #{tpu_custom_call.1} parent=11 // pred_check_branch
          %200 = sbr.rel (%p198) target = $region28
        $region27: #{tpu_custom_call.1} parent=11 // pred_region
          _
        $region28: #{tpu_custom_call.1} parent=11 // pred_fallthru
          _
      $region12: #{tpu_custom_call.1} parent=5 // pred_fallthru
        _
      %p201 = scmp.lt.s32.totalorder %s18, 2
      // Predicated region
      $region29: #{tpu_custom_call.1} parent=5 // pred_check
        %p202 = pneg %p201
      $region30: #{tpu_custom_call.1} parent=5 // pred_check_branch
        %204 = sbr.rel (%p202) target = $region32
      $region31: #{tpu_custom_call.1} parent=5 // pred_region
        // Predicated region
        $region33: #{tpu_custom_call.1} parent=31 // pred_check
          %p205 = pneg %p38
        $region34: #{tpu_custom_call.1} parent=31 // pred_check_branch
          %207 = sbr.rel (%p205) target = $region36
        $region35: #{tpu_custom_call.1} parent=31 // pred_region
          %s208 = sand.u32 %s28, 1
          %s209 = scalar_lea.sflag [#allocation3], %s208
          %s210 = sand.u32 %s28, 1
          %s211 = smul.addr %s210, 16
          %s212 = scalar_lea.vmem [#allocation2], %s211
          %s213 = smul.u32 2, %s18
          %s215 = ssub.s32 256, 256
          %216 = vsyncadd %s209, %s215
          %s217 = smul.addr %s213, 128
          %s218 = scalar_lea.hbm %s0, %s217
          %s219 = sshll.u32 %s212, 4
          %s220 = int_to_ptr.vmem [resolvable:$true] %s219
          %225 = dma.hbm_to_vmem [thread:$0]  %s218, 256, %s220, %s209, 128, 128, 8
        $region36: #{tpu_custom_call.1} parent=31 // pred_fallthru
          _
      $region32: #{tpu_custom_call.1} parent=5 // pred_fallthru
        _
      %p226 = scmp.le.s32.totalorder 1, %s18
      %p227 = scmp.lt.s32.totalorder %s18, 3
      %p228 = pnand %p226, %p227
      %p229 = pneg %p228
      // Predicated region
      $region37: #{tpu_custom_call.1} parent=5 // pred_check
        _
      $region38: #{tpu_custom_call.1} parent=5 // pred_check_branch
        %231 = sbr.rel (%p228) target = $region40
      $region39: #{tpu_custom_call.1} parent=5 // pred_region
        %s232 = ssub.s32 %s18, 1
        %s233 = sand.u32 %s31, 1
        %s234 = scalar_lea.sflag [#allocation3], %s233
        %s235 = sand.u32 %s31, 1
        %s236 = smul.addr %s235, 16
        %s237 = scalar_lea.vmem [#allocation2], %s236
        // Predicated region
        $region41: #{tpu_custom_call.1} parent=39 // pred_check
          %p238 = pneg %p44
        $region42: #{tpu_custom_call.1} parent=39 // pred_check_branch
          %240 = sbr.rel (%p238) target = $region44
        $region43: #{tpu_custom_call.1} parent=39 // pred_region
          %241 = dma.done %s234, 256
        $region44: #{tpu_custom_call.1} parent=39 // pred_fallthru
          _
        // Predicated region
        $region45: #{tpu_custom_call.1} parent=39 // pred_check
          %p242 = pneg %p65
        $region46: #{tpu_custom_call.1} parent=39 // pred_check_branch
          %244 = sbr.rel (%p242) target = $region48
        $region47: #{tpu_custom_call.1} parent=39 // pred_region
          %245 = dma.done [#allocation6], 256
        $region48: #{tpu_custom_call.1} parent=39 // pred_fallthru
          _
        // Predicated region
        $region49: #{tpu_custom_call.1} parent=39 // pred_check
          %p246 = pneg %p107
        $region50: #{tpu_custom_call.1} parent=39 // pred_check_branch
          %248 = sbr.rel (%p246) target = $region52
        $region51: #{tpu_custom_call.1} parent=39 // pred_region
          %249 = dma.done [#allocation6], 256
        $region52: #{tpu_custom_call.1} parent=39 // pred_fallthru
          _
        %s250 = sand.u32 %s31, 1
        %s251 = scalar_lea.sflag [#allocation3], %s250
        %s252 = sand.u32 %s31, 1
        %s253 = smul.addr %s252, 16
        %s254 = scalar_lea.vmem [#allocation2], %s253
        %p255 = pneg %p44
        %p256 = pneg %p41
        %p257 = pneg %p65
        %p258 = pneg %p62
        %p259 = pneg %p86
        %p260 = pneg %p83
        %p261 = pneg %p107
        %p262 = pneg %p104
        %p263 = pneg %p128
        %p264 = pneg %p125
        %p265 = pneg %p154
        %p266 = pneg %p151
        %s267 = sand.u32 %s141, 1
        %s268 = scalar_lea.sflag [#allocation4], %s267
        %s269 = sand.u32 %s141, 1
        %s270 = smul.addr %s269, 16
        %s271 = scalar_lea.vmem [#allocation8], %s270
        %s272 = smul.u32 2, %s23
        %s273 = smul.u32 2, %s23
        %v275 = vld [vmem:[%s237] sm:$0xff]
        %v276 = vld [vmem:[%s237 + $0x8] sm:$0xff]
        %v277 = vpack.c.bf16 %v276, %v275
        %v278 = vld [vmem:[#allocation5] sm:$0xf]
        %v279 = vld [vmem:[#allocation5 + $0x4] sm:$0xf]
        %v280 = vld [vmem:[#allocation5 + $0x8] sm:$0xf]
        %v281 = vld [vmem:[#allocation5 + $0xc] sm:$0xf]
        %v282 = vld [vmem:[%s2] sm:$0x1]
        %v284 = vlaneseq
        %v285 = vshrl.u32 %v284, 7
        %v286 = vsub.s32 0, %v285
        %v287 = vrot.slane %v282, %v286
        %v293 = vunpack.c.l.b16 %v278
        %v294 = vunpack.c.l.b16 %v279
        %v295 = vunpack.c.l.b16 %v280
        %v296 = vunpack.c.l.b16 %v281
        %v297 = vpack.c.b16 %v294, %v293
        %v298 = vpack.c.b16 %v296, %v295
        %vm301 = vcmask 261120
        %v303 = vsel %vm301, %v277, 0
        %305 = vmatprep.subr.bf16.mxu0 0
        %306 = vmatpush1.bf16.msra.mxu0 %v297
        %307 = vmatprep.subr.bf16.mxu0 0
        %308 = vmatpush1.bf16.msra.mxu0 %v298
        %309 = vmatprep.subr.bf16.mxu0 0
        %310 = vmatpush1.bf16.msra.mxu0 0
        %311 = vmatprep.subr.bf16.mxu0 0
        %312 = vmatpush1.bf16.msra.mxu0 0
        %313 = vmatprep.subr.bf16.mxu0 0
        %314 = vmatpush1.bf16.msra.mxu0 0
        %315 = vmatprep.subr.bf16.mxu0 0
        %316 = vmatpush1.bf16.msra.mxu0 0
        %317 = vmatprep.subr.bf16.mxu0 0
        %318 = vmatpush1.bf16.msra.mxu0 0
        %319 = vmatprep.subr.bf16.mxu0 0
        %320 = vmatpush1.bf16.msra.mxu0 0
        %321 = vmatprep.subr.bf16.mxu0 0
        %322 = vmatpush1.bf16.msra.mxu0 0
        %323 = vmatprep.subr.bf16.mxu0 0
        %324 = vmatpush1.bf16.msra.mxu0 0
        %325 = vmatprep.subr.bf16.mxu0 0
        %326 = vmatpush1.bf16.msra.mxu0 0
        %327 = vmatprep.subr.bf16.mxu0 0
        %328 = vmatpush1.bf16.msra.mxu0 0
        %329 = vmatprep.subr.bf16.mxu0 0
        %330 = vmatpush1.bf16.msra.mxu0 0
        %331 = vmatprep.subr.bf16.mxu0 0
        %332 = vmatpush1.bf16.msra.mxu0 0
        %333 = vmatprep.subr.bf16.mxu0 0
        %334 = vmatpush1.bf16.msra.mxu0 0
        %335 = vmatprep.subr.bf16.mxu0 0
        %336 = vmatpush1.bf16.msra.mxu0 0
        %337 = vmatprep.mubr.bf16.mxu0 0
        %338 = vmatmul.mubr.bf16.gmra.mrb[0].mxu0 %v303
        %v339 = vpop.f32.mrb[0].mxu0
        %v340 = vadd.f32 %v287, %v339
        %v341 = vpop.f32.mrb[0].mxu0
        %v342 = vpop.f32.mrb[0].mxu0
        %v343 = vadd.f32 %v287, %v342
        %v344 = vpop.f32.mrb[0].mxu0
        %345 = vdwg.mxu0
        %v346 = vld [vmem:[%s4] sm:$0x1]
        %v347 = vpack.c.bf16 %v340, %v340
        %349 = vrot.lane.b32.xlu0 %v347, 96
        %v350 = vpop.permute.xlu0 %349
        %vm351 = vcmask 64512
        %v353 = vsel %vm351, %v347, 0
        %v356 = vsel %vm351, %v350, 0
        %358 = vmatprep.subr.bf16.mxu0 0
        %359 = vmatpush1.bf16.xpose.msra.mxu0 %v356
        %360 = vmatprep.subr.bf16.mxu0 0
        %361 = vmatpush1.bf16.xpose.msra.mxu0 0
        %362 = vmatprep.subr.bf16.mxu0 0
        %363 = vmatpush1.bf16.xpose.msra.mxu0 0
        %364 = vmatprep.subr.bf16.mxu0 0
        %365 = vmatpush1.bf16.xpose.msra.mxu0 0
        %366 = vmatprep.subr.bf16.mxu0 0
        %367 = vmatpush1.bf16.xpose.msra.mxu0 0
        %368 = vmatprep.subr.bf16.mxu0 0
        %369 = vmatpush1.bf16.xpose.msra.mxu0 0
        %370 = vmatprep.subr.bf16.mxu0 0
        %371 = vmatpush1.bf16.xpose.msra.mxu0 0
        %372 = vmatprep.subr.bf16.mxu0 0
        %373 = vmatpush1.bf16.xpose.msra.mxu0 0
        %374 = vmatprep.subr.bf16.mxu0 0
        %375 = vmatpush1.bf16.xpose.msra.mxu0 0
        %376 = vmatprep.subr.bf16.mxu0 0
        %377 = vmatpush1.bf16.xpose.msra.mxu0 0
        %378 = vmatprep.subr.bf16.mxu0 0
        %379 = vmatpush1.bf16.xpose.msra.mxu0 0
        %380 = vmatprep.subr.bf16.mxu0 0
        %381 = vmatpush1.bf16.xpose.msra.mxu0 0
        %382 = vmatprep.subr.bf16.mxu0 0
        %383 = vmatpush1.bf16.xpose.msra.mxu0 0
        %384 = vmatprep.subr.bf16.mxu0 0
        %385 = vmatpush1.bf16.xpose.msra.mxu0 0
        %386 = vmatprep.subr.bf16.mxu0 0
        %387 = vmatpush1.bf16.xpose.msra.mxu0 0
        %388 = vmatprep.subr.bf16.mxu0 0
        %389 = vmatpush1.bf16.xpose.msra.mxu0 0
        %390 = vmatprep.mubr.bf16.mxu0 0
        %391 = vmatmul.mubr.bf16.gmra.mrb[0].mxu0 %v353
        %v392 = vpop.f32.mrb[0].mxu0
        %v393 = vadd.f32 0.0, %v392
        %v394 = vpop.f32.mrb[0].mxu0
        %v395 = vpop.f32.mrb[0].mxu0
        %v396 = vpop.f32.mrb[0].mxu0
        %397 = vdwg.mxu0
        %v398 = vsel %vm351, %v393, -inf
        %399 = vmax.xlane.f32.xlu0 %v398
        %v400 = vpop.xlane.xlu0 %399
        %v401 = vsub.f32 %v393, %v400
        %v402 = vmul.f32 %v401, 1.442695
        %v403 = vpow.pop %v402
        %v404 = vsel %vm351, %v403, 0.0
        %405 = vadd.xlane.f32.xlu0 %v404
        %v406 = vpop.xlane.xlu0 %405
        %v407 = vrcp.pop %v406
        %v408 = vmul.f32 %v403, %v407
        %v409 = vpack.c.bf16 %v408, %v408
        %410 = vrot.lane.b32.xlu0 %v347, 64
        %v411 = vpop.permute.xlu0 %410
        %v413 = vsel %vm351, %v409, 0
        %vm415 = vcmask 1043456
        %v417 = vsel %vm415, %v411, 0
        %419 = vmatprep.subr.bf16.mxu0 0
        %420 = vmatpush1.bf16.msra.mxu0 %v417
        %421 = vmatprep.subr.bf16.mxu0 0
        %422 = vmatpush1.bf16.msra.mxu0 0
        %423 = vmatprep.subr.bf16.mxu0 0
        %424 = vmatpush1.bf16.msra.mxu0 0
        %425 = vmatprep.subr.bf16.mxu0 0
        %426 = vmatpush1.bf16.msra.mxu0 0
        %427 = vmatprep.subr.bf16.mxu0 0
        %428 = vmatpush1.bf16.msra.mxu0 0
        %429 = vmatprep.subr.bf16.mxu0 0
        %430 = vmatpush1.bf16.msra.mxu0 0
        %431 = vmatprep.subr.bf16.mxu0 0
        %432 = vmatpush1.bf16.msra.mxu0 0
        %433 = vmatprep.subr.bf16.mxu0 0
        %434 = vmatpush1.bf16.msra.mxu0 0
        %435 = vmatprep.subr.bf16.mxu0 0
        %436 = vmatpush1.bf16.msra.mxu0 0
        %437 = vmatprep.subr.bf16.mxu0 0
        %438 = vmatpush1.bf16.msra.mxu0 0
        %439 = vmatprep.subr.bf16.mxu0 0
        %440 = vmatpush1.bf16.msra.mxu0 0
        %441 = vmatprep.subr.bf16.mxu0 0
        %442 = vmatpush1.bf16.msra.mxu0 0
        %443 = vmatprep.subr.bf16.mxu0 0
        %444 = vmatpush1.bf16.msra.mxu0 0
        %445 = vmatprep.subr.bf16.mxu0 0
        %446 = vmatpush1.bf16.msra.mxu0 0
        %447 = vmatprep.subr.bf16.mxu0 0
        %448 = vmatpush1.bf16.msra.mxu0 0
        %449 = vmatprep.subr.bf16.mxu0 0
        %450 = vmatpush1.bf16.msra.mxu0 0
        %451 = vmatprep.mubr.bf16.mxu0 0
        %452 = vmatmul.mubr.bf16.gmra.mrb[0].mxu0 %v413
        %v453 = vpop.f32.mrb[0].mxu0
        %v454 = vadd.f32 0.0, %v453
        %v455 = vpop.f32.mrb[0].mxu0
        %v456 = vpop.f32.mrb[0].mxu0
        %v457 = vpop.f32.mrb[0].mxu0
        %458 = vdwg.mxu0
        %v459 = vpack.c.bf16 %v454, %v454
        %v460 = vld [vmem:[#allocation7] sm:$0xf]
        %461 = vrot.lane.b32.xlu0 %v347, 120
        %v462 = vpop.permute.xlu0 %461
        %463 = vrot.lane.b32.xlu0 %v347, 88
        %v464 = vpop.permute.xlu0 %463
        %v466 = vsel %vm351, %v462, 0
        %v469 = vsel %vm351, %v464, 0
        %471 = vmatprep.subr.bf16.mxu0 0
        %472 = vmatpush1.bf16.xpose.msra.mxu0 %v469
        %473 = vmatprep.subr.bf16.mxu0 0
        %474 = vmatpush1.bf16.xpose.msra.mxu0 0
        %475 = vmatprep.subr.bf16.mxu0 0
        %476 = vmatpush1.bf16.xpose.msra.mxu0 0
        %477 = vmatprep.subr.bf16.mxu0 0
        %478 = vmatpush1.bf16.xpose.msra.mxu0 0
        %479 = vmatprep.subr.bf16.mxu0 0
        %480 = vmatpush1.bf16.xpose.msra.mxu0 0
        %481 = vmatprep.subr.bf16.mxu0 0
        %482 = vmatpush1.bf16.xpose.msra.mxu0 0
        %483 = vmatprep.subr.bf16.mxu0 0
        %484 = vmatpush1.bf16.xpose.msra.mxu0 0
        %485 = vmatprep.subr.bf16.mxu0 0
        %486 = vmatpush1.bf16.xpose.msra.mxu0 0
        %487 = vmatprep.subr.bf16.mxu0 0
        %488 = vmatpush1.bf16.xpose.msra.mxu0 0
        %489 = vmatprep.subr.bf16.mxu0 0
        %490 = vmatpush1.bf16.xpose.msra.mxu0 0
        %491 = vmatprep.subr.bf16.mxu0 0
        %492 = vmatpush1.bf16.xpose.msra.mxu0 0
        %493 = vmatprep.subr.bf16.mxu0 0
        %494 = vmatpush1.bf16.xpose.msra.mxu0 0
        %495 = vmatprep.subr.bf16.mxu0 0
        %496 = vmatpush1.bf16.xpose.msra.mxu0 0
        %497 = vmatprep.subr.bf16.mxu0 0
        %498 = vmatpush1.bf16.xpose.msra.mxu0 0
        %499 = vmatprep.subr.bf16.mxu0 0
        %500 = vmatpush1.bf16.xpose.msra.mxu0 0
        %501 = vmatprep.subr.bf16.mxu0 0
        %502 = vmatpush1.bf16.xpose.msra.mxu0 0
        %503 = vmatprep.mubr.bf16.mxu0 0
        %504 = vmatmul.mubr.bf16.gmra.mrb[0].mxu0 %v466
        %v505 = vpop.f32.mrb[0].mxu0
        %v506 = vadd.f32 0.0, %v505
        %v507 = vpop.f32.mrb[0].mxu0
        %v508 = vpop.f32.mrb[0].mxu0
        %v509 = vpop.f32.mrb[0].mxu0
        %510 = vdwg.mxu0
        %v511 = vsel %vm351, %v506, -inf
        %512 = vmax.xlane.f32.xlu0 %v511
        %v513 = vpop.xlane.xlu0 %512
        %v514 = vsub.f32 %v506, %v513
        %v515 = vmul.f32 %v514, 1.442695
        %v516 = vpow.pop %v515
        %v517 = vsel %vm351, %v516, 0.0
        %518 = vadd.xlane.f32.xlu0 %v517
        %v519 = vpop.xlane.xlu0 %518
        %v520 = vrcp.pop %v519
        %v521 = vmul.f32 %v516, %v520
        %v522 = vpack.c.bf16 %v521, %v521
        %523 = vrot.lane.b32.xlu0 %v347, 56
        %v524 = vpop.permute.xlu0 %523
        %v526 = vsel %vm351, %v522, 0
        %v529 = vsel %vm415, %v524, 0
        %531 = vmatprep.subr.bf16.mxu0 0
        %532 = vmatpush1.bf16.msra.mxu0 %v529
        %533 = vmatprep.subr.bf16.mxu0 0
        %534 = vmatpush1.bf16.msra.mxu0 0
        %535 = vmatprep.subr.bf16.mxu0 0
        %536 = vmatpush1.bf16.msra.mxu0 0
        %537 = vmatprep.subr.bf16.mxu0 0
        %538 = vmatpush1.bf16.msra.mxu0 0
        %539 = vmatprep.subr.bf16.mxu0 0
        %540 = vmatpush1.bf16.msra.mxu0 0
        %541 = vmatprep.subr.bf16.mxu0 0
        %542 = vmatpush1.bf16.msra.mxu0 0
        %543 = vmatprep.subr.bf16.mxu0 0
        %544 = vmatpush1.bf16.msra.mxu0 0
        %545 = vmatprep.subr.bf16.mxu0 0
        %546 = vmatpush1.bf16.msra.mxu0 0
        %547 = vmatprep.subr.bf16.mxu0 0
        %548 = vmatpush1.bf16.msra.mxu0 0
        %549 = vmatprep.subr.bf16.mxu0 0
        %550 = vmatpush1.bf16.msra.mxu0 0
        %551 = vmatprep.subr.bf16.mxu0 0
        %552 = vmatpush1.bf16.msra.mxu0 0
        %553 = vmatprep.subr.bf16.mxu0 0
        %554 = vmatpush1.bf16.msra.mxu0 0
        %555 = vmatprep.subr.bf16.mxu0 0
        %556 = vmatpush1.bf16.msra.mxu0 0
        %557 = vmatprep.subr.bf16.mxu0 0
        %558 = vmatpush1.bf16.msra.mxu0 0
        %559 = vmatprep.subr.bf16.mxu0 0
        %560 = vmatpush1.bf16.msra.mxu0 0
        %561 = vmatprep.subr.bf16.mxu0 0
        %562 = vmatpush1.bf16.msra.mxu0 0
        %563 = vmatprep.mubr.bf16.mxu0 0
        %564 = vmatmul.mubr.bf16.gmra.mrb[0].mxu0 %v526
        %v565 = vpop.f32.mrb[0].mxu0
        %v566 = vadd.f32 0.0, %v565
        %v567 = vpop.f32.mrb[0].mxu0
        %v568 = vpop.f32.mrb[0].mxu0
        %v569 = vpop.f32.mrb[0].mxu0
        %570 = vdwg.mxu0
        %v571 = vpack.c.bf16 %v566, %v566
        %v572 = vld [vmem:[#allocation7 + $0x4] sm:$0xf]
        %v574 = vsel %vm351, %v571, 0
        %v577 = vsel %vm415, %v572, 0
        %579 = vmatprep.subr.bf16.mxu0 0
        %580 = vmatpush1.bf16.msra.mxu0 %v577
        %581 = vmatprep.subr.bf16.mxu0 0
        %582 = vmatpush1.bf16.msra.mxu0 0
        %583 = vmatprep.subr.bf16.mxu0 0
        %584 = vmatpush1.bf16.msra.mxu0 0
        %585 = vmatprep.subr.bf16.mxu0 0
        %586 = vmatpush1.bf16.msra.mxu0 0
        %587 = vmatprep.subr.bf16.mxu0 0
        %588 = vmatpush1.bf16.msra.mxu0 0
        %589 = vmatprep.subr.bf16.mxu0 0
        %590 = vmatpush1.bf16.msra.mxu0 0
        %591 = vmatprep.subr.bf16.mxu0 0
        %592 = vmatpush1.bf16.msra.mxu0 0
        %593 = vmatprep.subr.bf16.mxu0 0
        %594 = vmatpush1.bf16.msra.mxu0 0
        %595 = vmatprep.subr.bf16.mxu0 0
        %596 = vmatpush1.bf16.msra.mxu0 0
        %597 = vmatprep.subr.bf16.mxu0 0
        %598 = vmatpush1.bf16.msra.mxu0 0
        %599 = vmatprep.subr.bf16.mxu0 0
        %600 = vmatpush1.bf16.msra.mxu0 0
        %601 = vmatprep.subr.bf16.mxu0 0
        %602 = vmatpush1.bf16.msra.mxu0 0
        %603 = vmatprep.subr.bf16.mxu0 0
        %604 = vmatpush1.bf16.msra.mxu0 0
        %605 = vmatprep.subr.bf16.mxu0 0
        %606 = vmatpush1.bf16.msra.mxu0 0
        %607 = vmatprep.subr.bf16.mxu0 0
        %608 = vmatpush1.bf16.msra.mxu0 0
        %609 = vmatprep.subr.bf16.mxu0 0
        %610 = vmatpush1.bf16.msra.mxu0 0
        %611 = vmatprep.mubr.bf16.mxu0 0
        %612 = vmatmul.mubr.bf16.gmra.mrb[0].mxu0 %v574
        %v613 = vpop.f32.mrb[0].mxu0
        %v614 = vadd.f32 0.0, %v613
        %v615 = vpop.f32.mrb[0].mxu0
        %v616 = vpop.f32.mrb[0].mxu0
        %v617 = vpop.f32.mrb[0].mxu0
        %618 = vdwg.mxu0
        %v620 = vsel %vm351, %v459, 0
        %v623 = vsel %vm415, %v460, 0
        %625 = vmatprep.subr.bf16.mxu0 0
        %626 = vmatpush1.bf16.msra.mxu0 %v623
        %627 = vmatprep.subr.bf16.mxu0 0
        %628 = vmatpush1.bf16.msra.mxu0 0
        %629 = vmatprep.subr.bf16.mxu0 0
        %630 = vmatpush1.bf16.msra.mxu0 0
        %631 = vmatprep.subr.bf16.mxu0 0
        %632 = vmatpush1.bf16.msra.mxu0 0
        %633 = vmatprep.subr.bf16.mxu0 0
        %634 = vmatpush1.bf16.msra.mxu0 0
        %635 = vmatprep.subr.bf16.mxu0 0
        %636 = vmatpush1.bf16.msra.mxu0 0
        %637 = vmatprep.subr.bf16.mxu0 0
        %638 = vmatpush1.bf16.msra.mxu0 0
        %639 = vmatprep.subr.bf16.mxu0 0
        %640 = vmatpush1.bf16.msra.mxu0 0
        %641 = vmatprep.subr.bf16.mxu0 0
        %642 = vmatpush1.bf16.msra.mxu0 0
        %643 = vmatprep.subr.bf16.mxu0 0
        %644 = vmatpush1.bf16.msra.mxu0 0
        %645 = vmatprep.subr.bf16.mxu0 0
        %646 = vmatpush1.bf16.msra.mxu0 0
        %647 = vmatprep.subr.bf16.mxu0 0
        %648 = vmatpush1.bf16.msra.mxu0 0
        %649 = vmatprep.subr.bf16.mxu0 0
        %650 = vmatpush1.bf16.msra.mxu0 0
        %651 = vmatprep.subr.bf16.mxu0 0
        %652 = vmatpush1.bf16.msra.mxu0 0
        %653 = vmatprep.subr.bf16.mxu0 0
        %654 = vmatpush1.bf16.msra.mxu0 0
        %655 = vmatprep.subr.bf16.mxu0 0
        %656 = vmatpush1.bf16.msra.mxu0 0
        %657 = vmatprep.mubr.bf16.mxu0 0
        %658 = vmatmul.mubr.bf16.gmra.mrb[0].mxu0 %v620
        %v659 = vpop.f32.mrb[0].mxu0
        %v660 = vadd.f32 %v614, %v659
        %v661 = vpop.f32.mrb[0].mxu0
        %v662 = vpop.f32.mrb[0].mxu0
        %v663 = vpop.f32.mrb[0].mxu0
        %664 = vdwg.mxu0
        %665 = vrot.lane.b32.xlu0 %v347, 112
        %v666 = vpop.permute.xlu0 %665
        %667 = vrot.lane.b32.xlu0 %v347, 80
        %v668 = vpop.permute.xlu0 %667
        %v670 = vsel %vm351, %v666, 0
        %v673 = vsel %vm351, %v668, 0
        %675 = vmatprep.subr.bf16.mxu0 0
        %676 = vmatpush1.bf16.xpose.msra.mxu0 %v673
        %677 = vmatprep.subr.bf16.mxu0 0
        %678 = vmatpush1.bf16.xpose.msra.mxu0 0
        %679 = vmatprep.subr.bf16.mxu0 0
        %680 = vmatpush1.bf16.xpose.msra.mxu0 0
        %681 = vmatprep.subr.bf16.mxu0 0
        %682 = vmatpush1.bf16.xpose.msra.mxu0 0
        %683 = vmatprep.subr.bf16.mxu0 0
        %684 = vmatpush1.bf16.xpose.msra.mxu0 0
        %685 = vmatprep.subr.bf16.mxu0 0
        %686 = vmatpush1.bf16.xpose.msra.mxu0 0
        %687 = vmatprep.subr.bf16.mxu0 0
        %688 = vmatpush1.bf16.xpose.msra.mxu0 0
        %689 = vmatprep.subr.bf16.mxu0 0
        %690 = vmatpush1.bf16.xpose.msra.mxu0 0
        %691 = vmatprep.subr.bf16.mxu0 0
        %692 = vmatpush1.bf16.xpose.msra.mxu0 0
        %693 = vmatprep.subr.bf16.mxu0 0
        %694 = vmatpush1.bf16.xpose.msra.mxu0 0
        %695 = vmatprep.subr.bf16.mxu0 0
        %696 = vmatpush1.bf16.xpose.msra.mxu0 0
        %697 = vmatprep.subr.bf16.mxu0 0
        %698 = vmatpush1.bf16.xpose.msra.mxu0 0
        %699 = vmatprep.subr.bf16.mxu0 0
        %700 = vmatpush1.bf16.xpose.msra.mxu0 0
        %701 = vmatprep.subr.bf16.mxu0 0
        %702 = vmatpush1.bf16.xpose.msra.mxu0 0
        %703 = vmatprep.subr.bf16.mxu0 0
        %704 = vmatpush1.bf16.xpose.msra.mxu0 0
        %705 = vmatprep.subr.bf16.mxu0 0
        %706 = vmatpush1.bf16.xpose.msra.mxu0 0
        %707 = vmatprep.mubr.bf16.mxu0 0
        %708 = vmatmul.mubr.bf16.gmra.mrb[0].mxu0 %v670
        %v709 = vpop.f32.mrb[0].mxu0
        %v710 = vadd.f32 0.0, %v709
        %v711 = vpop.f32.mrb[0].mxu0
        %v712 = vpop.f32.mrb[0].mxu0
        %v713 = vpop.f32.mrb[0].mxu0
        %714 = vdwg.mxu0
        %v715 = vsel %vm351, %v710, -inf
        %716 = vmax.xlane.f32.xlu0 %v715
        %v717 = vpop.xlane.xlu0 %716
        %v718 = vsub.f32 %v710, %v717
        %v719 = vmul.f32 %v718, 1.442695
        %v720 = vpow.pop %v719
        %v721 = vsel %vm351, %v720, 0.0
        %722 = vadd.xlane.f32.xlu0 %v721
        %v723 = vpop.xlane.xlu0 %722
        %v724 = vrcp.pop %v723
        %v725 = vmul.f32 %v720, %v724
        %v726 = vpack.c.bf16 %v725, %v725
        %727 = vrot.lane.b32.xlu0 %v347, 48
        %v728 = vpop.permute.xlu0 %727
        %v730 = vsel %vm351, %v726, 0
        %v733 = vsel %vm415, %v728, 0
        %735 = vmatprep.subr.bf16.mxu0 0
        %736 = vmatpush1.bf16.msra.mxu0 %v733
        %737 = vmatprep.subr.bf16.mxu0 0
        %738 = vmatpush1.bf16.msra.mxu0 0
        %739 = vmatprep.subr.bf16.mxu0 0
        %740 = vmatpush1.bf16.msra.mxu0 0
        %741 = vmatprep.subr.bf16.mxu0 0
        %742 = vmatpush1.bf16.msra.mxu0 0
        %743 = vmatprep.subr.bf16.mxu0 0
        %744 = vmatpush1.bf16.msra.mxu0 0
        %745 = vmatprep.subr.bf16.mxu0 0
        %746 = vmatpush1.bf16.msra.mxu0 0
        %747 = vmatprep.subr.bf16.mxu0 0
        %748 = vmatpush1.bf16.msra.mxu0 0
        %749 = vmatprep.subr.bf16.mxu0 0
        %750 = vmatpush1.bf16.msra.mxu0 0
        %751 = vmatprep.subr.bf16.mxu0 0
        %752 = vmatpush1.bf16.msra.mxu0 0
        %753 = vmatprep.subr.bf16.mxu0 0
        %754 = vmatpush1.bf16.msra.mxu0 0
        %755 = vmatprep.subr.bf16.mxu0 0
        %756 = vmatpush1.bf16.msra.mxu0 0
        %757 = vmatprep.subr.bf16.mxu0 0
        %758 = vmatpush1.bf16.msra.mxu0 0
        %759 = vmatprep.subr.bf16.mxu0 0
        %760 = vmatpush1.bf16.msra.mxu0 0
        %761 = vmatprep.subr.bf16.mxu0 0
        %762 = vmatpush1.bf16.msra.mxu0 0
        %763 = vmatprep.subr.bf16.mxu0 0
        %764 = vmatpush1.bf16.msra.mxu0 0
        %765 = vmatprep.subr.bf16.mxu0 0
        %766 = vmatpush1.bf16.msra.mxu0 0
        %767 = vmatprep.mubr.bf16.mxu0 0
        %768 = vmatmul.mubr.bf16.gmra.mrb[0].mxu0 %v730
        %v769 = vpop.f32.mrb[0].mxu0
        %v770 = vadd.f32 0.0, %v769
        %v771 = vpop.f32.mrb[0].mxu0
        %v772 = vpop.f32.mrb[0].mxu0
        %v773 = vpop.f32.mrb[0].mxu0
        %774 = vdwg.mxu0
        %v775 = vpack.c.bf16 %v770, %v770
        %v776 = vld [vmem:[#allocation7 + $0x8] sm:$0xf]
        %v778 = vsel %vm351, %v775, 0
        %v781 = vsel %vm415, %v776, 0
        %783 = vmatprep.subr.bf16.mxu0 0
        %784 = vmatpush1.bf16.msra.mxu0 %v781
        %785 = vmatprep.subr.bf16.mxu0 0
        %786 = vmatpush1.bf16.msra.mxu0 0
        %787 = vmatprep.subr.bf16.mxu0 0
        %788 = vmatpush1.bf16.msra.mxu0 0
        %789 = vmatprep.subr.bf16.mxu0 0
        %790 = vmatpush1.bf16.msra.mxu0 0
        %791 = vmatprep.subr.bf16.mxu0 0
        %792 = vmatpush1.bf16.msra.mxu0 0
        %793 = vmatprep.subr.bf16.mxu0 0
        %794 = vmatpush1.bf16.msra.mxu0 0
        %795 = vmatprep.subr.bf16.mxu0 0
        %796 = vmatpush1.bf16.msra.mxu0 0
        %797 = vmatprep.subr.bf16.mxu0 0
        %798 = vmatpush1.bf16.msra.mxu0 0
        %799 = vmatprep.subr.bf16.mxu0 0
        %800 = vmatpush1.bf16.msra.mxu0 0
        %801 = vmatprep.subr.bf16.mxu0 0
        %802 = vmatpush1.bf16.msra.mxu0 0
        %803 = vmatprep.subr.bf16.mxu0 0
        %804 = vmatpush1.bf16.msra.mxu0 0
        %805 = vmatprep.subr.bf16.mxu0 0
        %806 = vmatpush1.bf16.msra.mxu0 0
        %807 = vmatprep.subr.bf16.mxu0 0
        %808 = vmatpush1.bf16.msra.mxu0 0
        %809 = vmatprep.subr.bf16.mxu0 0
        %810 = vmatpush1.bf16.msra.mxu0 0
        %811 = vmatprep.subr.bf16.mxu0 0
        %812 = vmatpush1.bf16.msra.mxu0 0
        %813 = vmatprep.subr.bf16.mxu0 0
        %814 = vmatpush1.bf16.msra.mxu0 0
        %815 = vmatprep.mubr.bf16.mxu0 0
        %816 = vmatmul.mubr.bf16.gmra.mrb[0].mxu0 %v778
        %v817 = vpop.f32.mrb[0].mxu0
        %v818 = vadd.f32 0.0, %v817
        %v819 = vpop.f32.mrb[0].mxu0
        %v820 = vpop.f32.mrb[0].mxu0
        %v821 = vpop.f32.mrb[0].mxu0
        %822 = vdwg.mxu0
        %v823 = vadd.f32 %v660, %v818
        %824 = vrot.lane.b32.xlu0 %v347, 104
        %v825 = vpop.permute.xlu0 %824
        %826 = vrot.lane.b32.xlu0 %v347, 72
        %v827 = vpop.permute.xlu0 %826
        %v829 = vsel %vm351, %v825, 0
        %v832 = vsel %vm351, %v827, 0
        %834 = vmatprep.subr.bf16.mxu0 0
        %835 = vmatpush1.bf16.xpose.msra.mxu0 %v832
        %836 = vmatprep.subr.bf16.mxu0 0
        %837 = vmatpush1.bf16.xpose.msra.mxu0 0
        %838 = vmatprep.subr.bf16.mxu0 0
        %839 = vmatpush1.bf16.xpose.msra.mxu0 0
        %840 = vmatprep.subr.bf16.mxu0 0
        %841 = vmatpush1.bf16.xpose.msra.mxu0 0
        %842 = vmatprep.subr.bf16.mxu0 0
        %843 = vmatpush1.bf16.xpose.msra.mxu0 0
        %844 = vmatprep.subr.bf16.mxu0 0
        %845 = vmatpush1.bf16.xpose.msra.mxu0 0
        %846 = vmatprep.subr.bf16.mxu0 0
        %847 = vmatpush1.bf16.xpose.msra.mxu0 0
        %848 = vmatprep.subr.bf16.mxu0 0
        %849 = vmatpush1.bf16.xpose.msra.mxu0 0
        %850 = vmatprep.subr.bf16.mxu0 0
        %851 = vmatpush1.bf16.xpose.msra.mxu0 0
        %852 = vmatprep.subr.bf16.mxu0 0
        %853 = vmatpush1.bf16.xpose.msra.mxu0 0
        %854 = vmatprep.subr.bf16.mxu0 0
        %855 = vmatpush1.bf16.xpose.msra.mxu0 0
        %856 = vmatprep.subr.bf16.mxu0 0
        %857 = vmatpush1.bf16.xpose.msra.mxu0 0
        %858 = vmatprep.subr.bf16.mxu0 0
        %859 = vmatpush1.bf16.xpose.msra.mxu0 0
        %860 = vmatprep.subr.bf16.mxu0 0
        %861 = vmatpush1.bf16.xpose.msra.mxu0 0
        %862 = vmatprep.subr.bf16.mxu0 0
        %863 = vmatpush1.bf16.xpose.msra.mxu0 0
        %864 = vmatprep.subr.bf16.mxu0 0
        %865 = vmatpush1.bf16.xpose.msra.mxu0 0
        %866 = vmatprep.mubr.bf16.mxu0 0
        %867 = vmatmul.mubr.bf16.gmra.mrb[0].mxu0 %v829
        %v868 = vpop.f32.mrb[0].mxu0
        %v869 = vadd.f32 0.0, %v868
        %v870 = vpop.f32.mrb[0].mxu0
        %v871 = vpop.f32.mrb[0].mxu0
        %v872 = vpop.f32.mrb[0].mxu0
        %873 = vdwg.mxu0
        %v874 = vsel %vm351, %v869, -inf
        %875 = vmax.xlane.f32.xlu0 %v874
        %v876 = vpop.xlane.xlu0 %875
        %v877 = vsub.f32 %v869, %v876
        %v878 = vmul.f32 %v877, 1.442695
        %v879 = vpow.pop %v878
        %v880 = vsel %vm351, %v879, 0.0
        %881 = vadd.xlane.f32.xlu0 %v880
        %v882 = vpop.xlane.xlu0 %881
        %v883 = vrcp.pop %v882
        %v884 = vmul.f32 %v879, %v883
        %v885 = vpack.c.bf16 %v884, %v884
        %886 = vrot.lane.b32.xlu0 %v347, 40
        %v887 = vpop.permute.xlu0 %886
        %v889 = vsel %vm351, %v885, 0
        %v892 = vsel %vm415, %v887, 0
        %894 = vmatprep.subr.bf16.mxu0 0
        %895 = vmatpush1.bf16.msra.mxu0 %v892
        %896 = vmatprep.subr.bf16.mxu0 0
        %897 = vmatpush1.bf16.msra.mxu0 0
        %898 = vmatprep.subr.bf16.mxu0 0
        %899 = vmatpush1.bf16.msra.mxu0 0
        %900 = vmatprep.subr.bf16.mxu0 0
        %901 = vmatpush1.bf16.msra.mxu0 0
        %902 = vmatprep.subr.bf16.mxu0 0
        %903 = vmatpush1.bf16.msra.mxu0 0
        %904 = vmatprep.subr.bf16.mxu0 0
        %905 = vmatpush1.bf16.msra.mxu0 0
        %906 = vmatprep.subr.bf16.mxu0 0
        %907 = vmatpush1.bf16.msra.mxu0 0
        %908 = vmatprep.subr.bf16.mxu0 0
        %909 = vmatpush1.bf16.msra.mxu0 0
        %910 = vmatprep.subr.bf16.mxu0 0
        %911 = vmatpush1.bf16.msra.mxu0 0
        %912 = vmatprep.subr.bf16.mxu0 0
        %913 = vmatpush1.bf16.msra.mxu0 0
        %914 = vmatprep.subr.bf16.mxu0 0
        %915 = vmatpush1.bf16.msra.mxu0 0
        %916 = vmatprep.subr.bf16.mxu0 0
        %917 = vmatpush1.bf16.msra.mxu0 0
        %918 = vmatprep.subr.bf16.mxu0 0
        %919 = vmatpush1.bf16.msra.mxu0 0
        %920 = vmatprep.subr.bf16.mxu0 0
        %921 = vmatpush1.bf16.msra.mxu0 0
        %922 = vmatprep.subr.bf16.mxu0 0
        %923 = vmatpush1.bf16.msra.mxu0 0
        %924 = vmatprep.subr.bf16.mxu0 0
        %925 = vmatpush1.bf16.msra.mxu0 0
        %926 = vmatprep.mubr.bf16.mxu0 0
        %927 = vmatmul.mubr.bf16.gmra.mrb[0].mxu0 %v889
        %v928 = vpop.f32.mrb[0].mxu0
        %v929 = vadd.f32 0.0, %v928
        %v930 = vpop.f32.mrb[0].mxu0
        %v931 = vpop.f32.mrb[0].mxu0
        %v932 = vpop.f32.mrb[0].mxu0
        %933 = vdwg.mxu0
        %v934 = vpack.c.bf16 %v929, %v929
        %v935 = vld [vmem:[#allocation7 + $0xc] sm:$0xf]
        %v937 = vsel %vm351, %v934, 0
        %v940 = vsel %vm415, %v935, 0
        %942 = vmatprep.subr.bf16.mxu0 0
        %943 = vmatpush1.bf16.msra.mxu0 %v940
        %944 = vmatprep.subr.bf16.mxu0 0
        %945 = vmatpush1.bf16.msra.mxu0 0
        %946 = vmatprep.subr.bf16.mxu0 0
        %947 = vmatpush1.bf16.msra.mxu0 0
        %948 = vmatprep.subr.bf16.mxu0 0
        %949 = vmatpush1.bf16.msra.mxu0 0
        %950 = vmatprep.subr.bf16.mxu0 0
        %951 = vmatpush1.bf16.msra.mxu0 0
        %952 = vmatprep.subr.bf16.mxu0 0
        %953 = vmatpush1.bf16.msra.mxu0 0
        %954 = vmatprep.subr.bf16.mxu0 0
        %955 = vmatpush1.bf16.msra.mxu0 0
        %956 = vmatprep.subr.bf16.mxu0 0
        %957 = vmatpush1.bf16.msra.mxu0 0
        %958 = vmatprep.subr.bf16.mxu0 0
        %959 = vmatpush1.bf16.msra.mxu0 0
        %960 = vmatprep.subr.bf16.mxu0 0
        %961 = vmatpush1.bf16.msra.mxu0 0
        %962 = vmatprep.subr.bf16.mxu0 0
        %963 = vmatpush1.bf16.msra.mxu0 0
        %964 = vmatprep.subr.bf16.mxu0 0
        %965 = vmatpush1.bf16.msra.mxu0 0
        %966 = vmatprep.subr.bf16.mxu0 0
        %967 = vmatpush1.bf16.msra.mxu0 0
        %968 = vmatprep.subr.bf16.mxu0 0
        %969 = vmatpush1.bf16.msra.mxu0 0
        %970 = vmatprep.subr.bf16.mxu0 0
        %971 = vmatpush1.bf16.msra.mxu0 0
        %972 = vmatprep.subr.bf16.mxu0 0
        %973 = vmatpush1.bf16.msra.mxu0 0
        %974 = vmatprep.mubr.bf16.mxu0 0
        %975 = vmatmul.mubr.bf16.gmra.mrb[0].mxu0 %v937
        %v976 = vpop.f32.mrb[0].mxu0
        %v977 = vadd.f32 0.0, %v976
        %v978 = vpop.f32.mrb[0].mxu0
        %v979 = vpop.f32.mrb[0].mxu0
        %v980 = vpop.f32.mrb[0].mxu0
        %981 = vdwg.mxu0
        %v982 = vadd.f32 %v823, %v977
        %v984 = vlaneseq
        %v985 = vshrl.u32 %v984, 7
        %v986 = vsub.s32 0, %v985
        %v987 = vrot.slane %v346, %v986
        %v989 = vadd.f32 %v982, %v987
        %990 = vst.msk [vmem:[%s271] sm:$0xff] %vm301, %v989
        %v991 = vpack.c.bf16 %v343, %v343
        %993 = vrot.lane.b32.xlu0 %v991, 96
        %v994 = vpop.permute.xlu0 %993
        %v996 = vsel %vm351, %v991, 0
        %v999 = vsel %vm351, %v994, 0
        %1001 = vmatprep.subr.bf16.mxu0 0
        %1002 = vmatpush1.bf16.xpose.msra.mxu0 %v999
        %1003 = vmatprep.subr.bf16.mxu0 0
        %1004 = vmatpush1.bf16.xpose.msra.mxu0 0
        %1005 = vmatprep.subr.bf16.mxu0 0
        %1006 = vmatpush1.bf16.xpose.msra.mxu0 0
        %1007 = vmatprep.subr.bf16.mxu0 0
        %1008 = vmatpush1.bf16.xpose.msra.mxu0 0
        %1009 = vmatprep.subr.bf16.mxu0 0
        %1010 = vmatpush1.bf16.xpose.msra.mxu0 0
        %1011 = vmatprep.subr.bf16.mxu0 0
        %1012 = vmatpush1.bf16.xpose.msra.mxu0 0
        %1013 = vmatprep.subr.bf16.mxu0 0
        %1014 = vmatpush1.bf16.xpose.msra.mxu0 0
        %1015 = vmatprep.subr.bf16.mxu0 0
        %1016 = vmatpush1.bf16.xpose.msra.mxu0 0
        %1017 = vmatprep.subr.bf16.mxu0 0
        %1018 = vmatpush1.bf16.xpose.msra.mxu0 0
        %1019 = vmatprep.subr.bf16.mxu0 0
        %1020 = vmatpush1.bf16.xpose.msra.mxu0 0
        %1021 = vmatprep.subr.bf16.mxu0 0
        %1022 = vmatpush1.bf16.xpose.msra.mxu0 0
        %1023 = vmatprep.subr.bf16.mxu0 0
        %1024 = vmatpush1.bf16.xpose.msra.mxu0 0
        %1025 = vmatprep.subr.bf16.mxu0 0
        %1026 = vmatpush1.bf16.xpose.msra.mxu0 0
        %1027 = vmatprep.subr.bf16.mxu0 0
        %1028 = vmatpush1.bf16.xpose.msra.mxu0 0
        %1029 = vmatprep.subr.bf16.mxu0 0
        %1030 = vmatpush1.bf16.xpose.msra.mxu0 0
        %1031 = vmatprep.subr.bf16.mxu0 0
        %1032 = vmatpush1.bf16.xpose.msra.mxu0 0
        %1033 = vmatprep.mubr.bf16.mxu0 0
        %1034 = vmatmul.mubr.bf16.gmra.mrb[0].mxu0 %v996
        %v1035 = vpop.f32.mrb[0].mxu0
        %v1036 = vadd.f32 0.0, %v1035
        %v1037 = vpop.f32.mrb[0].mxu0
        %v1038 = vpop.f32.mrb[0].mxu0
        %v1039 = vpop.f32.mrb[0].mxu0
        %1040 = vdwg.mxu0
        %v1041 = vsel %vm351, %v1036, -inf
        %1042 = vmax.xlane.f32.xlu0 %v1041
        %v1043 = vpop.xlane.xlu0 %1042
        %v1044 = vsub.f32 %v1036, %v1043
        %v1045 = vmul.f32 %v1044, 1.442695
        %v1046 = vpow.pop %v1045
        %v1047 = vsel %vm351, %v1046, 0.0
        %1048 = vadd.xlane.f32.xlu0 %v1047
        %v1049 = vpop.xlane.xlu0 %1048
        %v1050 = vrcp.pop %v1049
        %v1051 = vmul.f32 %v1046, %v1050
        %v1052 = vpack.c.bf16 %v1051, %v1051
        %1053 = vrot.lane.b32.xlu0 %v991, 64
        %v1054 = vpop.permute.xlu0 %1053
        %v1056 = vsel %vm351, %v1052, 0
        %v1059 = vsel %vm415, %v1054, 0
        %1061 = vmatprep.subr.bf16.mxu0 0
        %1062 = vmatpush1.bf16.msra.mxu0 %v1059
        %1063 = vmatprep.subr.bf16.mxu0 0
        %1064 = vmatpush1.bf16.msra.mxu0 0
        %1065 = vmatprep.subr.bf16.mxu0 0
        %1066 = vmatpush1.bf16.msra.mxu0 0
        %1067 = vmatprep.subr.bf16.mxu0 0
        %1068 = vmatpush1.bf16.msra.mxu0 0
        %1069 = vmatprep.subr.bf16.mxu0 0
        %1070 = vmatpush1.bf16.msra.mxu0 0
        %1071 = vmatprep.subr.bf16.mxu0 0
        %1072 = vmatpush1.bf16.msra.mxu0 0
        %1073 = vmatprep.subr.bf16.mxu0 0
        %1074 = vmatpush1.bf16.msra.mxu0 0
        %1075 = vmatprep.subr.bf16.mxu0 0
        %1076 = vmatpush1.bf16.msra.mxu0 0
        %1077 = vmatprep.subr.bf16.mxu0 0
        %1078 = vmatpush1.bf16.msra.mxu0 0
        %1079 = vmatprep.subr.bf16.mxu0 0
        %1080 = vmatpush1.bf16.msra.mxu0 0
        %1081 = vmatprep.subr.bf16.mxu0 0
        %1082 = vmatpush1.bf16.msra.mxu0 0
        %1083 = vmatprep.subr.bf16.mxu0 0
        %1084 = vmatpush1.bf16.msra.mxu0 0
        %1085 = vmatprep.subr.bf16.mxu0 0
        %1086 = vmatpush1.bf16.msra.mxu0 0
        %1087 = vmatprep.subr.bf16.mxu0 0
        %1088 = vmatpush1.bf16.msra.mxu0 0
        %1089 = vmatprep.subr.bf16.mxu0 0
        %1090 = vmatpush1.bf16.msra.mxu0 0
        %1091 = vmatprep.subr.bf16.mxu0 0
        %1092 = vmatpush1.bf16.msra.mxu0 0
        %1093 = vmatprep.mubr.bf16.mxu0 0
        %1094 = vmatmul.mubr.bf16.gmra.mrb[0].mxu0 %v1056
        %v1095 = vpop.f32.mrb[0].mxu0
        %v1096 = vadd.f32 0.0, %v1095
        %v1097 = vpop.f32.mrb[0].mxu0
        %v1098 = vpop.f32.mrb[0].mxu0
        %v1099 = vpop.f32.mrb[0].mxu0
        %1100 = vdwg.mxu0
        %v1101 = vpack.c.bf16 %v1096, %v1096
        %v1102 = vld [vmem:[#allocation7] sm:$0xf]
        %1103 = vrot.lane.b32.xlu0 %v991, 120
        %v1104 = vpop.permute.xlu0 %1103
        %1105 = vrot.lane.b32.xlu0 %v991, 88
        %v1106 = vpop.permute.xlu0 %1105
        %v1108 = vsel %vm351, %v1104, 0
        %v1111 = vsel %vm351, %v1106, 0
        %1113 = vmatprep.subr.bf16.mxu0 0
        %1114 = vmatpush1.bf16.xpose.msra.mxu0 %v1111
        %1115 = vmatprep.subr.bf16.mxu0 0
        %1116 = vmatpush1.bf16.xpose.msra.mxu0 0
        %1117 = vmatprep.subr.bf16.mxu0 0
        %1118 = vmatpush1.bf16.xpose.msra.mxu0 0
        %1119 = vmatprep.subr.bf16.mxu0 0
        %1120 = vmatpush1.bf16.xpose.msra.mxu0 0
        %1121 = vmatprep.subr.bf16.mxu0 0
        %1122 = vmatpush1.bf16.xpose.msra.mxu0 0
        %1123 = vmatprep.subr.bf16.mxu0 0
        %1124 = vmatpush1.bf16.xpose.msra.mxu0 0
        %1125 = vmatprep.subr.bf16.mxu0 0
        %1126 = vmatpush1.bf16.xpose.msra.mxu0 0
        %1127 = vmatprep.subr.bf16.mxu0 0
        %1128 = vmatpush1.bf16.xpose.msra.mxu0 0
        %1129 = vmatprep.subr.bf16.mxu0 0
        %1130 = vmatpush1.bf16.xpose.msra.mxu0 0
        %1131 = vmatprep.subr.bf16.mxu0 0
        %1132 = vmatpush1.bf16.xpose.msra.mxu0 0
        %1133 = vmatprep.subr.bf16.mxu0 0
        %1134 = vmatpush1.bf16.xpose.msra.mxu0 0
        %1135 = vmatprep.subr.bf16.mxu0 0
        %1136 = vmatpush1.bf16.xpose.msra.mxu0 0
        %1137 = vmatprep.subr.bf16.mxu0 0
        %1138 = vmatpush1.bf16.xpose.msra.mxu0 0
        %1139 = vmatprep.subr.bf16.mxu0 0
        %1140 = vmatpush1.bf16.xpose.msra.mxu0 0
        %1141 = vmatprep.subr.bf16.mxu0 0
        %1142 = vmatpush1.bf16.xpose.msra.mxu0 0
        %1143 = vmatprep.subr.bf16.mxu0 0
        %1144 = vmatpush1.bf16.xpose.msra.mxu0 0
        %1145 = vmatprep.mubr.bf16.mxu0 0
        %1146 = vmatmul.mubr.bf16.gmra.mrb[0].mxu0 %v1108
        %v1147 = vpop.f32.mrb[0].mxu0
        %v1148 = vadd.f32 0.0, %v1147
        %v1149 = vpop.f32.mrb[0].mxu0
        %v1150 = vpop.f32.mrb[0].mxu0
        %v1151 = vpop.f32.mrb[0].mxu0
        %1152 = vdwg.mxu0
        %v1153 = vsel %vm351, %v1148, -inf
        %1154 = vmax.xlane.f32.xlu0 %v1153
        %v1155 = vpop.xlane.xlu0 %1154
        %v1156 = vsub.f32 %v1148, %v1155
        %v1157 = vmul.f32 %v1156, 1.442695
        %v1158 = vpow.pop %v1157
        %v1159 = vsel %vm351, %v1158, 0.0
        %1160 = vadd.xlane.f32.xlu0 %v1159
        %v1161 = vpop.xlane.xlu0 %1160
        %v1162 = vrcp.pop %v1161
        %v1163 = vmul.f32 %v1158, %v1162
        %v1164 = vpack.c.bf16 %v1163, %v1163
        %1165 = vrot.lane.b32.xlu0 %v991, 56
        %v1166 = vpop.permute.xlu0 %1165
        %v1168 = vsel %vm351, %v1164, 0
        %v1171 = vsel %vm415, %v1166, 0
        %1173 = vmatprep.subr.bf16.mxu0 0
        %1174 = vmatpush1.bf16.msra.mxu0 %v1171
        %1175 = vmatprep.subr.bf16.mxu0 0
        %1176 = vmatpush1.bf16.msra.mxu0 0
        %1177 = vmatprep.subr.bf16.mxu0 0
        %1178 = vmatpush1.bf16.msra.mxu0 0
        %1179 = vmatprep.subr.bf16.mxu0 0
        %1180 = vmatpush1.bf16.msra.mxu0 0
        %1181 = vmatprep.subr.bf16.mxu0 0
        %1182 = vmatpush1.bf16.msra.mxu0 0
        %1183 = vmatprep.subr.bf16.mxu0 0
        %1184 = vmatpush1.bf16.msra.mxu0 0
        %1185 = vmatprep.subr.bf16.mxu0 0
        %1186 = vmatpush1.bf16.msra.mxu0 0
        %1187 = vmatprep.subr.bf16.mxu0 0
        %1188 = vmatpush1.bf16.msra.mxu0 0
        %1189 = vmatprep.subr.bf16.mxu0 0
        %1190 = vmatpush1.bf16.msra.mxu0 0
        %1191 = vmatprep.subr.bf16.mxu0 0
        %1192 = vmatpush1.bf16.msra.mxu0 0
        %1193 = vmatprep.subr.bf16.mxu0 0
        %1194 = vmatpush1.bf16.msra.mxu0 0
        %1195 = vmatprep.subr.bf16.mxu0 0
        %1196 = vmatpush1.bf16.msra.mxu0 0
        %1197 = vmatprep.subr.bf16.mxu0 0
        %1198 = vmatpush1.bf16.msra.mxu0 0
        %1199 = vmatprep.subr.bf16.mxu0 0
        %1200 = vmatpush1.bf16.msra.mxu0 0
        %1201 = vmatprep.subr.bf16.mxu0 0
        %1202 = vmatpush1.bf16.msra.mxu0 0
        %1203 = vmatprep.subr.bf16.mxu0 0
        %1204 = vmatpush1.bf16.msra.mxu0 0
        %1205 = vmatprep.mubr.bf16.mxu0 0
        %1206 = vmatmul.mubr.bf16.gmra.mrb[0].mxu0 %v1168
        %v1207 = vpop.f32.mrb[0].mxu0
        %v1208 = vadd.f32 0.0, %v1207
        %v1209 = vpop.f32.mrb[0].mxu0
        %v1210 = vpop.f32.mrb[0].mxu0
        %v1211 = vpop.f32.mrb[0].mxu0
        %1212 = vdwg.mxu0
        %v1213 = vpack.c.bf16 %v1208, %v1208
        %v1214 = vld [vmem:[#allocation7 + $0x4] sm:$0xf]
        %v1216 = vsel %vm351, %v1213, 0
        %v1219 = vsel %vm415, %v1214, 0
        %1221 = vmatprep.subr.bf16.mxu0 0
        %1222 = vmatpush1.bf16.msra.mxu0 %v1219
        %1223 = vmatprep.subr.bf16.mxu0 0
        %1224 = vmatpush1.bf16.msra.mxu0 0
        %1225 = vmatprep.subr.bf16.mxu0 0
        %1226 = vmatpush1.bf16.msra.mxu0 0
        %1227 = vmatprep.subr.bf16.mxu0 0
        %1228 = vmatpush1.bf16.msra.mxu0 0
        %1229 = vmatprep.subr.bf16.mxu0 0
        %1230 = vmatpush1.bf16.msra.mxu0 0
        %1231 = vmatprep.subr.bf16.mxu0 0
        %1232 = vmatpush1.bf16.msra.mxu0 0
        %1233 = vmatprep.subr.bf16.mxu0 0
        %1234 = vmatpush1.bf16.msra.mxu0 0
        %1235 = vmatprep.subr.bf16.mxu0 0
        %1236 = vmatpush1.bf16.msra.mxu0 0
        %1237 = vmatprep.subr.bf16.mxu0 0
        %1238 = vmatpush1.bf16.msra.mxu0 0
        %1239 = vmatprep.subr.bf16.mxu0 0
        %1240 = vmatpush1.bf16.msra.mxu0 0
        %1241 = vmatprep.subr.bf16.mxu0 0
        %1242 = vmatpush1.bf16.msra.mxu0 0
        %1243 = vmatprep.subr.bf16.mxu0 0
        %1244 = vmatpush1.bf16.msra.mxu0 0
        %1245 = vmatprep.subr.bf16.mxu0 0
        %1246 = vmatpush1.bf16.msra.mxu0 0
        %1247 = vmatprep.subr.bf16.mxu0 0
        %1248 = vmatpush1.bf16.msra.mxu0 0
        %1249 = vmatprep.subr.bf16.mxu0 0
        %1250 = vmatpush1.bf16.msra.mxu0 0
        %1251 = vmatprep.subr.bf16.mxu0 0
        %1252 = vmatpush1.bf16.msra.mxu0 0
        %1253 = vmatprep.mubr.bf16.mxu0 0
        %1254 = vmatmul.mubr.bf16.gmra.mrb[0].mxu0 %v1216
        %v1255 = vpop.f32.mrb[0].mxu0
        %v1256 = vadd.f32 0.0, %v1255
        %v1257 = vpop.f32.mrb[0].mxu0
        %v1258 = vpop.f32.mrb[0].mxu0
        %v1259 = vpop.f32.mrb[0].mxu0
        %1260 = vdwg.mxu0
        %v1262 = vsel %vm351, %v1101, 0
        %v1265 = vsel %vm415, %v1102, 0
        %1267 = vmatprep.subr.bf16.mxu0 0
        %1268 = vmatpush1.bf16.msra.mxu0 %v1265
        %1269 = vmatprep.subr.bf16.mxu0 0
        %1270 = vmatpush1.bf16.msra.mxu0 0
        %1271 = vmatprep.subr.bf16.mxu0 0
        %1272 = vmatpush1.bf16.msra.mxu0 0
        %1273 = vmatprep.subr.bf16.mxu0 0
        %1274 = vmatpush1.bf16.msra.mxu0 0
        %1275 = vmatprep.subr.bf16.mxu0 0
        %1276 = vmatpush1.bf16.msra.mxu0 0
        %1277 = vmatprep.subr.bf16.mxu0 0
        %1278 = vmatpush1.bf16.msra.mxu0 0
        %1279 = vmatprep.subr.bf16.mxu0 0
        %1280 = vmatpush1.bf16.msra.mxu0 0
        %1281 = vmatprep.subr.bf16.mxu0 0
        %1282 = vmatpush1.bf16.msra.mxu0 0
        %1283 = vmatprep.subr.bf16.mxu0 0
        %1284 = vmatpush1.bf16.msra.mxu0 0
        %1285 = vmatprep.subr.bf16.mxu0 0
        %1286 = vmatpush1.bf16.msra.mxu0 0
        %1287 = vmatprep.subr.bf16.mxu0 0
        %1288 = vmatpush1.bf16.msra.mxu0 0
        %1289 = vmatprep.subr.bf16.mxu0 0
        %1290 = vmatpush1.bf16.msra.mxu0 0
        %1291 = vmatprep.subr.bf16.mxu0 0
        %1292 = vmatpush1.bf16.msra.mxu0 0
        %1293 = vmatprep.subr.bf16.mxu0 0
        %1294 = vmatpush1.bf16.msra.mxu0 0
        %1295 = vmatprep.subr.bf16.mxu0 0
        %1296 = vmatpush1.bf16.msra.mxu0 0
        %1297 = vmatprep.subr.bf16.mxu0 0
        %1298 = vmatpush1.bf16.msra.mxu0 0
        %1299 = vmatprep.mubr.bf16.mxu0 0
        %1300 = vmatmul.mubr.bf16.gmra.mrb[0].mxu0 %v1262
        %v1301 = vpop.f32.mrb[0].mxu0
        %v1302 = vadd.f32 %v1256, %v1301
        %v1303 = vpop.f32.mrb[0].mxu0
        %v1304 = vpop.f32.mrb[0].mxu0
        %v1305 = vpop.f32.mrb[0].mxu0
        %1306 = vdwg.mxu0
        %1307 = vrot.lane.b32.xlu0 %v991, 112
        %v1308 = vpop.permute.xlu0 %1307
        %1309 = vrot.lane.b32.xlu0 %v991, 80
        %v1310 = vpop.permute.xlu0 %1309
        %v1312 = vsel %vm351, %v1308, 0
        %v1315 = vsel %vm351, %v1310, 0
        %1317 = vmatprep.subr.bf16.mxu0 0
        %1318 = vmatpush1.bf16.xpose.msra.mxu0 %v1315
        %1319 = vmatprep.subr.bf16.mxu0 0
        %1320 = vmatpush1.bf16.xpose.msra.mxu0 0
        %1321 = vmatprep.subr.bf16.mxu0 0
        %1322 = vmatpush1.bf16.xpose.msra.mxu0 0
        %1323 = vmatprep.subr.bf16.mxu0 0
        %1324 = vmatpush1.bf16.xpose.msra.mxu0 0
        %1325 = vmatprep.subr.bf16.mxu0 0
        %1326 = vmatpush1.bf16.xpose.msra.mxu0 0
        %1327 = vmatprep.subr.bf16.mxu0 0
        %1328 = vmatpush1.bf16.xpose.msra.mxu0 0
        %1329 = vmatprep.subr.bf16.mxu0 0
        %1330 = vmatpush1.bf16.xpose.msra.mxu0 0
        %1331 = vmatprep.subr.bf16.mxu0 0
        %1332 = vmatpush1.bf16.xpose.msra.mxu0 0
        %1333 = vmatprep.subr.bf16.mxu0 0
        %1334 = vmatpush1.bf16.xpose.msra.mxu0 0
        %1335 = vmatprep.subr.bf16.mxu0 0
        %1336 = vmatpush1.bf16.xpose.msra.mxu0 0
        %1337 = vmatprep.subr.bf16.mxu0 0
        %1338 = vmatpush1.bf16.xpose.msra.mxu0 0
        %1339 = vmatprep.subr.bf16.mxu0 0
        %1340 = vmatpush1.bf16.xpose.msra.mxu0 0
        %1341 = vmatprep.subr.bf16.mxu0 0
        %1342 = vmatpush1.bf16.xpose.msra.mxu0 0
        %1343 = vmatprep.subr.bf16.mxu0 0
        %1344 = vmatpush1.bf16.xpose.msra.mxu0 0
        %1345 = vmatprep.subr.bf16.mxu0 0
        %1346 = vmatpush1.bf16.xpose.msra.mxu0 0
        %1347 = vmatprep.subr.bf16.mxu0 0
        %1348 = vmatpush1.bf16.xpose.msra.mxu0 0
        %1349 = vmatprep.mubr.bf16.mxu0 0
        %1350 = vmatmul.mubr.bf16.gmra.mrb[0].mxu0 %v1312
        %v1351 = vpop.f32.mrb[0].mxu0
        %v1352 = vadd.f32 0.0, %v1351
        %v1353 = vpop.f32.mrb[0].mxu0
        %v1354 = vpop.f32.mrb[0].mxu0
        %v1355 = vpop.f32.mrb[0].mxu0
        %1356 = vdwg.mxu0
        %v1357 = vsel %vm351, %v1352, -inf
        %1358 = vmax.xlane.f32.xlu0 %v1357
        %v1359 = vpop.xlane.xlu0 %1358
        %v1360 = vsub.f32 %v1352, %v1359
        %v1361 = vmul.f32 %v1360, 1.442695
        %v1362 = vpow.pop %v1361
        %v1363 = vsel %vm351, %v1362, 0.0
        %1364 = vadd.xlane.f32.xlu0 %v1363
        %v1365 = vpop.xlane.xlu0 %1364
        %v1366 = vrcp.pop %v1365
        %v1367 = vmul.f32 %v1362, %v1366
        %v1368 = vpack.c.bf16 %v1367, %v1367
        %1369 = vrot.lane.b32.xlu0 %v991, 48
        %v1370 = vpop.permute.xlu0 %1369
        %v1372 = vsel %vm351, %v1368, 0
        %v1375 = vsel %vm415, %v1370, 0
        %1377 = vmatprep.subr.bf16.mxu0 0
        %1378 = vmatpush1.bf16.msra.mxu0 %v1375
        %1379 = vmatprep.subr.bf16.mxu0 0
        %1380 = vmatpush1.bf16.msra.mxu0 0
        %1381 = vmatprep.subr.bf16.mxu0 0
        %1382 = vmatpush1.bf16.msra.mxu0 0
        %1383 = vmatprep.subr.bf16.mxu0 0
        %1384 = vmatpush1.bf16.msra.mxu0 0
        %1385 = vmatprep.subr.bf16.mxu0 0
        %1386 = vmatpush1.bf16.msra.mxu0 0
        %1387 = vmatprep.subr.bf16.mxu0 0
        %1388 = vmatpush1.bf16.msra.mxu0 0
        %1389 = vmatprep.subr.bf16.mxu0 0
        %1390 = vmatpush1.bf16.msra.mxu0 0
        %1391 = vmatprep.subr.bf16.mxu0 0
        %1392 = vmatpush1.bf16.msra.mxu0 0
        %1393 = vmatprep.subr.bf16.mxu0 0
        %1394 = vmatpush1.bf16.msra.mxu0 0
        %1395 = vmatprep.subr.bf16.mxu0 0
        %1396 = vmatpush1.bf16.msra.mxu0 0
        %1397 = vmatprep.subr.bf16.mxu0 0
        %1398 = vmatpush1.bf16.msra.mxu0 0
        %1399 = vmatprep.subr.bf16.mxu0 0
        %1400 = vmatpush1.bf16.msra.mxu0 0
        %1401 = vmatprep.subr.bf16.mxu0 0
        %1402 = vmatpush1.bf16.msra.mxu0 0
        %1403 = vmatprep.subr.bf16.mxu0 0
        %1404 = vmatpush1.bf16.msra.mxu0 0
        %1405 = vmatprep.subr.bf16.mxu0 0
        %1406 = vmatpush1.bf16.msra.mxu0 0
        %1407 = vmatprep.subr.bf16.mxu0 0
        %1408 = vmatpush1.bf16.msra.mxu0 0
        %1409 = vmatprep.mubr.bf16.mxu0 0
        %1410 = vmatmul.mubr.bf16.gmra.mrb[0].mxu0 %v1372
        %v1411 = vpop.f32.mrb[0].mxu0
        %v1412 = vadd.f32 0.0, %v1411
        %v1413 = vpop.f32.mrb[0].mxu0
        %v1414 = vpop.f32.mrb[0].mxu0
        %v1415 = vpop.f32.mrb[0].mxu0
        %1416 = vdwg.mxu0
        %v1417 = vpack.c.bf16 %v1412, %v1412
        %v1418 = vld [vmem:[#allocation7 + $0x8] sm:$0xf]
        %v1420 = vsel %vm351, %v1417, 0
        %v1423 = vsel %vm415, %v1418, 0
        %1425 = vmatprep.subr.bf16.mxu0 0
        %1426 = vmatpush1.bf16.msra.mxu0 %v1423
        %1427 = vmatprep.subr.bf16.mxu0 0
        %1428 = vmatpush1.bf16.msra.mxu0 0
        %1429 = vmatprep.subr.bf16.mxu0 0
        %1430 = vmatpush1.bf16.msra.mxu0 0
        %1431 = vmatprep.subr.bf16.mxu0 0
        %1432 = vmatpush1.bf16.msra.mxu0 0
        %1433 = vmatprep.subr.bf16.mxu0 0
        %1434 = vmatpush1.bf16.msra.mxu0 0
        %1435 = vmatprep.subr.bf16.mxu0 0
        %1436 = vmatpush1.bf16.msra.mxu0 0
        %1437 = vmatprep.subr.bf16.mxu0 0
        %1438 = vmatpush1.bf16.msra.mxu0 0
        %1439 = vmatprep.subr.bf16.mxu0 0
        %1440 = vmatpush1.bf16.msra.mxu0 0
        %1441 = vmatprep.subr.bf16.mxu0 0
        %1442 = vmatpush1.bf16.msra.mxu0 0
        %1443 = vmatprep.subr.bf16.mxu0 0
        %1444 = vmatpush1.bf16.msra.mxu0 0
        %1445 = vmatprep.subr.bf16.mxu0 0
        %1446 = vmatpush1.bf16.msra.mxu0 0
        %1447 = vmatprep.subr.bf16.mxu0 0
        %1448 = vmatpush1.bf16.msra.mxu0 0
        %1449 = vmatprep.subr.bf16.mxu0 0
        %1450 = vmatpush1.bf16.msra.mxu0 0
        %1451 = vmatprep.subr.bf16.mxu0 0
        %1452 = vmatpush1.bf16.msra.mxu0 0
        %1453 = vmatprep.subr.bf16.mxu0 0
        %1454 = vmatpush1.bf16.msra.mxu0 0
        %1455 = vmatprep.subr.bf16.mxu0 0
        %1456 = vmatpush1.bf16.msra.mxu0 0
        %1457 = vmatprep.mubr.bf16.mxu0 0
        %1458 = vmatmul.mubr.bf16.gmra.mrb[0].mxu0 %v1420
        %v1459 = vpop.f32.mrb[0].mxu0
        %v1460 = vadd.f32 0.0, %v1459
        %v1461 = vpop.f32.mrb[0].mxu0
        %v1462 = vpop.f32.mrb[0].mxu0
        %v1463 = vpop.f32.mrb[0].mxu0
        %1464 = vdwg.mxu0
        %v1465 = vadd.f32 %v1302, %v1460
        %1466 = vrot.lane.b32.xlu0 %v991, 104
        %v1467 = vpop.permute.xlu0 %1466
        %1468 = vrot.lane.b32.xlu0 %v991, 72
        %v1469 = vpop.permute.xlu0 %1468
        %v1471 = vsel %vm351, %v1467, 0
        %v1474 = vsel %vm351, %v1469, 0
        %1476 = vmatprep.subr.bf16.mxu0 0
        %1477 = vmatpush1.bf16.xpose.msra.mxu0 %v1474
        %1478 = vmatprep.subr.bf16.mxu0 0
        %1479 = vmatpush1.bf16.xpose.msra.mxu0 0
        %1480 = vmatprep.subr.bf16.mxu0 0
        %1481 = vmatpush1.bf16.xpose.msra.mxu0 0
        %1482 = vmatprep.subr.bf16.mxu0 0
        %1483 = vmatpush1.bf16.xpose.msra.mxu0 0
        %1484 = vmatprep.subr.bf16.mxu0 0
        %1485 = vmatpush1.bf16.xpose.msra.mxu0 0
        %1486 = vmatprep.subr.bf16.mxu0 0
        %1487 = vmatpush1.bf16.xpose.msra.mxu0 0
        %1488 = vmatprep.subr.bf16.mxu0 0
        %1489 = vmatpush1.bf16.xpose.msra.mxu0 0
        %1490 = vmatprep.subr.bf16.mxu0 0
        %1491 = vmatpush1.bf16.xpose.msra.mxu0 0
        %1492 = vmatprep.subr.bf16.mxu0 0
        %1493 = vmatpush1.bf16.xpose.msra.mxu0 0
        %1494 = vmatprep.subr.bf16.mxu0 0
        %1495 = vmatpush1.bf16.xpose.msra.mxu0 0
        %1496 = vmatprep.subr.bf16.mxu0 0
        %1497 = vmatpush1.bf16.xpose.msra.mxu0 0
        %1498 = vmatprep.subr.bf16.mxu0 0
        %1499 = vmatpush1.bf16.xpose.msra.mxu0 0
        %1500 = vmatprep.subr.bf16.mxu0 0
        %1501 = vmatpush1.bf16.xpose.msra.mxu0 0
        %1502 = vmatprep.subr.bf16.mxu0 0
        %1503 = vmatpush1.bf16.xpose.msra.mxu0 0
        %1504 = vmatprep.subr.bf16.mxu0 0
        %1505 = vmatpush1.bf16.xpose.msra.mxu0 0
        %1506 = vmatprep.subr.bf16.mxu0 0
        %1507 = vmatpush1.bf16.xpose.msra.mxu0 0
        %1508 = vmatprep.mubr.bf16.mxu0 0
        %1509 = vmatmul.mubr.bf16.gmra.mrb[0].mxu0 %v1471
        %v1510 = vpop.f32.mrb[0].mxu0
        %v1511 = vadd.f32 0.0, %v1510
        %v1512 = vpop.f32.mrb[0].mxu0
        %v1513 = vpop.f32.mrb[0].mxu0
        %v1514 = vpop.f32.mrb[0].mxu0
        %1515 = vdwg.mxu0
        %v1516 = vsel %vm351, %v1511, -inf
        %1517 = vmax.xlane.f32.xlu0 %v1516
        %v1518 = vpop.xlane.xlu0 %1517
        %v1519 = vsub.f32 %v1511, %v1518
        %v1520 = vmul.f32 %v1519, 1.442695
        %v1521 = vpow.pop %v1520
        %v1522 = vsel %vm351, %v1521, 0.0
        %1523 = vadd.xlane.f32.xlu0 %v1522
        %v1524 = vpop.xlane.xlu0 %1523
        %v1525 = vrcp.pop %v1524
        %v1526 = vmul.f32 %v1521, %v1525
        %v1527 = vpack.c.bf16 %v1526, %v1526
        %1528 = vrot.lane.b32.xlu0 %v991, 40
        %v1529 = vpop.permute.xlu0 %1528
        %v1531 = vsel %vm351, %v1527, 0
        %v1534 = vsel %vm415, %v1529, 0
        %1536 = vmatprep.subr.bf16.mxu0 0
        %1537 = vmatpush1.bf16.msra.mxu0 %v1534
        %1538 = vmatprep.subr.bf16.mxu0 0
        %1539 = vmatpush1.bf16.msra.mxu0 0
        %1540 = vmatprep.subr.bf16.mxu0 0
        %1541 = vmatpush1.bf16.msra.mxu0 0
        %1542 = vmatprep.subr.bf16.mxu0 0
        %1543 = vmatpush1.bf16.msra.mxu0 0
        %1544 = vmatprep.subr.bf16.mxu0 0
        %1545 = vmatpush1.bf16.msra.mxu0 0
        %1546 = vmatprep.subr.bf16.mxu0 0
        %1547 = vmatpush1.bf16.msra.mxu0 0
        %1548 = vmatprep.subr.bf16.mxu0 0
        %1549 = vmatpush1.bf16.msra.mxu0 0
        %1550 = vmatprep.subr.bf16.mxu0 0
        %1551 = vmatpush1.bf16.msra.mxu0 0
        %1552 = vmatprep.subr.bf16.mxu0 0
        %1553 = vmatpush1.bf16.msra.mxu0 0
        %1554 = vmatprep.subr.bf16.mxu0 0
        %1555 = vmatpush1.bf16.msra.mxu0 0
        %1556 = vmatprep.subr.bf16.mxu0 0
        %1557 = vmatpush1.bf16.msra.mxu0 0
        %1558 = vmatprep.subr.bf16.mxu0 0
        %1559 = vmatpush1.bf16.msra.mxu0 0
        %1560 = vmatprep.subr.bf16.mxu0 0
        %1561 = vmatpush1.bf16.msra.mxu0 0
        %1562 = vmatprep.subr.bf16.mxu0 0
        %1563 = vmatpush1.bf16.msra.mxu0 0
        %1564 = vmatprep.subr.bf16.mxu0 0
        %1565 = vmatpush1.bf16.msra.mxu0 0
        %1566 = vmatprep.subr.bf16.mxu0 0
        %1567 = vmatpush1.bf16.msra.mxu0 0
        %1568 = vmatprep.mubr.bf16.mxu0 0
        %1569 = vmatmul.mubr.bf16.gmra.mrb[0].mxu0 %v1531
        %v1570 = vpop.f32.mrb[0].mxu0
        %v1571 = vadd.f32 0.0, %v1570
        %v1572 = vpop.f32.mrb[0].mxu0
        %v1573 = vpop.f32.mrb[0].mxu0
        %v1574 = vpop.f32.mrb[0].mxu0
        %1575 = vdwg.mxu0
        %v1576 = vpack.c.bf16 %v1571, %v1571
        %v1577 = vld [vmem:[#allocation7 + $0xc] sm:$0xf]
        %v1579 = vsel %vm351, %v1576, 0
        %v1582 = vsel %vm415, %v1577, 0
        %1584 = vmatprep.subr.bf16.mxu0 0
        %1585 = vmatpush1.bf16.msra.mxu0 %v1582
        %1586 = vmatprep.subr.bf16.mxu0 0
        %1587 = vmatpush1.bf16.msra.mxu0 0
        %1588 = vmatprep.subr.bf16.mxu0 0
        %1589 = vmatpush1.bf16.msra.mxu0 0
        %1590 = vmatprep.subr.bf16.mxu0 0
        %1591 = vmatpush1.bf16.msra.mxu0 0
        %1592 = vmatprep.subr.bf16.mxu0 0
        %1593 = vmatpush1.bf16.msra.mxu0 0
        %1594 = vmatprep.subr.bf16.mxu0 0
        %1595 = vmatpush1.bf16.msra.mxu0 0
        %1596 = vmatprep.subr.bf16.mxu0 0
        %1597 = vmatpush1.bf16.msra.mxu0 0
        %1598 = vmatprep.subr.bf16.mxu0 0
        %1599 = vmatpush1.bf16.msra.mxu0 0
        %1600 = vmatprep.subr.bf16.mxu0 0
        %1601 = vmatpush1.bf16.msra.mxu0 0
        %1602 = vmatprep.subr.bf16.mxu0 0
        %1603 = vmatpush1.bf16.msra.mxu0 0
        %1604 = vmatprep.subr.bf16.mxu0 0
        %1605 = vmatpush1.bf16.msra.mxu0 0
        %1606 = vmatprep.subr.bf16.mxu0 0
        %1607 = vmatpush1.bf16.msra.mxu0 0
        %1608 = vmatprep.subr.bf16.mxu0 0
        %1609 = vmatpush1.bf16.msra.mxu0 0
        %1610 = vmatprep.subr.bf16.mxu0 0
        %1611 = vmatpush1.bf16.msra.mxu0 0
        %1612 = vmatprep.subr.bf16.mxu0 0
        %1613 = vmatpush1.bf16.msra.mxu0 0
        %1614 = vmatprep.subr.bf16.mxu0 0
        %1615 = vmatpush1.bf16.msra.mxu0 0
        %1616 = vmatprep.mubr.bf16.mxu0 0
        %1617 = vmatmul.mubr.bf16.gmra.mrb[0].mxu0 %v1579
        %v1618 = vpop.f32.mrb[0].mxu0
        %v1619 = vadd.f32 0.0, %v1618
        %v1620 = vpop.f32.mrb[0].mxu0
        %v1621 = vpop.f32.mrb[0].mxu0
        %v1622 = vpop.f32.mrb[0].mxu0
        %1623 = vdwg.mxu0
        %v1624 = vadd.f32 %v1465, %v1619
        %v1625 = vadd.f32 %v1624, %v987
        %s1626 = scalar_lea.vmem %s271, 8 [#allocation8]
        %1627 = vst.msk [vmem:[%s1626] sm:$0xff] %vm301, %v1625
        %s1628 = sand.u32 %s141, 1
        %s1629 = scalar_lea.sflag [#allocation4], %s1628
        %s1630 = sand.u32 %s141, 1
        %s1631 = smul.addr %s1630, 16
        %s1632 = scalar_lea.vmem [#allocation8], %s1631
        // Predicated region
        $region53: #{tpu_custom_call.1} parent=39 // pred_check
          %p1633 = pneg %p151
        $region54: #{tpu_custom_call.1} parent=39 // pred_check_branch
          %1635 = sbr.rel (%p1633) target = $region56
        $region55: #{tpu_custom_call.1} parent=39 // pred_region
          %s1636 = smul.u32 2, %s23
          %s1638 = ssub.s32 256, 256
          %1639 = vsyncadd %s1629, %s1638
          %s1640 = smul.addr %s1636, 128
          %s1641 = scalar_lea.hbm %s5, %s1640
          %s1642 = sshll.u32 %s1632, 4
          %s1643 = int_to_ptr.vmem [resolvable:$true] %s1642
          %1648 = dma.vmem_to_hbm [thread:$0]  %s1643, 256, %s1641, %s1629, 128, 128, 8
        $region56: #{tpu_custom_call.1} parent=39 // pred_fallthru
          _
      $region40: #{tpu_custom_call.1} parent=5 // pred_fallthru
        _
      %p1649 = scmp.le.s32.totalorder 2, %s18
      // Predicated region
      $region57: #{tpu_custom_call.1} parent=5 // pred_check
        %p1650 = pneg %p1649
      $region58: #{tpu_custom_call.1} parent=5 // pred_check_branch
        %1652 = sbr.rel (%p1650) target = $region60
      $region59: #{tpu_custom_call.1} parent=5 // pred_region
        %s1653 = ssub.s32 %s18, 2
        // Predicated region
        $region61: #{tpu_custom_call.1} parent=59 // pred_check
          %p1654 = pneg %p157
        $region62: #{tpu_custom_call.1} parent=59 // pred_check_branch
          %1656 = sbr.rel (%p1654) target = $region64
        $region63: #{tpu_custom_call.1} parent=59 // pred_region
          %s1657 = sand.u32 %s142, 1
          %s1658 = scalar_lea.sflag [#allocation4], %s1657
          %s1659 = sand.u32 %s142, 1
          %s1660 = smul.addr %s1659, 16
          %s1661 = scalar_lea.vmem [#allocation8], %s1660
          %1662 = dma.done %s1658, 256
        $region64: #{tpu_custom_call.1} parent=59 // pred_fallthru
          _
      $region60: #{tpu_custom_call.1} parent=5 // pred_fallthru
        _
    $region6: #{tpu_custom_call.1} parent=1 // loop_footer
      %s22 = sadd.s32 1, %s18
    $region7: #{tpu_custom_call.1} parent=1 // loop_footer_branch
      %17 = sbr.rel target = $region3
    $region8: #{tpu_custom_call.1} parent=1 // loop_exit
      _
    %1663 = vsyncpa [#allocation3], 1
    %s1664 = scalar_lea.sflag [#allocation3], 1
    %1665 = vsyncpa %s1664, 1
    %1666 = vsyncpa [#allocation6], 1
    %1667 = vsyncpa [#allocation4], 1
    %s1668 = scalar_lea.sflag [#allocation4], 1
    %1669 = vsyncpa %s1668, 1

</llo_original>
